<compile_context>
chip_gen: v7x
topology: tpu7x:2x2x1
jax: 0.10.0
libtpu: 0.0.40
codegen_flags: <defaults>
</compile_context>

<pallas_src>
import functools

import jax
import jax.numpy as jnp
from jax.experimental import pallas as pl
from jax.experimental.pallas import tpu as pltpu

# Plain Python float (NOT jnp.float32): avoids the captured-constant error
# and avoids inf-inf NaNs in the online-softmax rescaling.
_NEG = -1e30


def _nce_kernel(ent_ref, ctx_ref, score_ref, part_ref, *rest,
                block_b, b_valid, dual_loss, ragged):
    if dual_loss:
        colpart_ref, m_row, l_row, diag_row = rest
    else:
        m_row, l_row, diag_row = rest

    i = pl.program_id(0)          # row block (ent) — "parallel"
    j = pl.program_id(1)          # col block (ctx) — innermost reduction
    nj = pl.num_programs(1)
    bb = block_b

    # Score tile on the MXU: (1,1)-contraction (no ctx.T relayout), native
    # input dtype in, f32 accumulation out.
    # TODO(synk): verify via bundle dump that this orientation does not emit
    # a vxpose on the MXU push once the kernel is MXU-bound.
    s_raw = jax.lax.dot_general(
        ent_ref[...], ctx_ref[...],
        dimension_numbers=(((1,), (1,)), ((), ())),
        preferred_element_type=jnp.float32)                   # (bb, bb) f32
    score_ref[...] = s_raw.astype(score_ref.dtype)

    # Padding masks exist only when B % bb != 0 (static); the divisible case
    # pays zero masking cost on every tile.
    if ragged:
        gcol = j * bb + jax.lax.broadcasted_iota(jnp.int32, (1, bb), 1)
        s = jnp.where(gcol < b_valid, s_raw, _NEG)
    else:
        s = s_raw

    # ---- per-row-block state init on the first col block ----
    @pl.when(j == 0)
    def _():
        m_row[...] = jnp.full_like(m_row, _NEG)
        l_row[...] = jnp.zeros_like(l_row)
        diag_row[...] = jnp.zeros_like(diag_row)

    # ---- online softmax across column blocks ----
    tile_max = jnp.max(s, axis=-1, keepdims=True)             # (bb, 1)
    m_prev = m_row[...]
    m_new = jnp.maximum(m_prev, tile_max)
    alpha = jnp.exp(m_prev - m_new)
    l_row[...] = alpha * l_row[...] + jnp.sum(jnp.exp(s - m_new),
                                              axis=-1, keepdims=True)
    m_row[...] = m_new

    # ---- diagonal (target) logits live only on diagonal tiles ----
    @pl.when(i == j)
    def _():
        lr = jax.lax.broadcasted_iota(jnp.int32, (bb, bb), 0)
        lc = jax.lax.broadcasted_iota(jnp.int32, (bb, bb), 1)
        diag_row[...] = jnp.sum(jnp.where(lr == lc, s_raw, 0.0),
                                axis=-1, keepdims=True)

    # ---- dual_loss: per-(i,j) column partials, merged in the wrapper ----
    if dual_loss:
        if ragged:
            grow = i * bb + jax.lax.broadcasted_iota(jnp.int32, (bb, 1), 0)
            s_col = jnp.where(grow < b_valid, s_raw, _NEG)
        else:
            s_col = s_raw
        cmax = jnp.max(s_col, axis=0, keepdims=True)           # (1, bb)
        csum = jnp.sum(jnp.exp(s_col - cmax), axis=0, keepdims=True)
        colpart_ref[0, 0] = jnp.concatenate([cmax, csum], axis=0)

    # ---- finalize this row block on the last column block ----
    @pl.when(j == nj - 1)
    def _():
        lse = m_row[...] + jnp.log(l_row[...])                 # (bb, 1)
        per_row_loss = lse - diag_row[...]
        # Accuracy fast path: the diagonal is included in the masked row max,
        # so prediction == target  <=>  diag == max  <=>  diag >= max.
        # (Differs from torch first-index argmax only on exact float ties.)
        hit = (diag_row[...] >= m_row[...]).astype(jnp.float32)
        dvec = diag_row[...]
        if ragged:
            grow = i * bb + jax.lax.broadcasted_iota(jnp.int32, (bb, 1), 0)
            rv = grow < b_valid
            per_row_loss = jnp.where(rv, per_row_loss, 0.0)
            hit = jnp.where(rv, hit, 0.0)
            dvec = jnp.where(rv, dvec, 0.0)
        row_loss = jnp.sum(per_row_loss)
        correct = jnp.sum(hit)
        diag_sum = jnp.sum(dvec)

        # Lane-dense (8,128) slab of scalar partials (no (1,1) masked stores).
        sub = jax.lax.broadcasted_iota(jnp.int32, (8, 128), 0)
        lane = jax.lax.broadcasted_iota(jnp.int32, (8, 128), 1)
        out = jnp.where((sub == 0) & (lane == 0), row_loss,
                        jnp.zeros((8, 128), jnp.float32))
        out = jnp.where((sub == 0) & (lane == 1), correct, out)
        out = jnp.where((sub == 0) & (lane == 2), diag_sum, out)
        part_ref[0] = out


def _round_up(x, m):
    return (x + m - 1) // m * m


def _pick_block(B, D, block_b, in_bytes, score_bytes,
                vmem_budget=44 * 1024 * 1024):
    """Largest 128-multiple block fitting the VMEM budget (fits v7x 64 MiB).

    Per-step VMEM ~= 2 inputs * 2 buffers * bb*D*in_bytes
                   + 2 buffers   * bb*bb*score_bytes
                   + ~4 f32 (bb,bb) intermediates.
    """
    cap = max(_round_up(min(block_b, _round_up(B, 128)), 128), 128)
    bb = 128
    for cand in (1024, 896, 768, 640, 512, 384, 256, 128):
        if cand > cap:
            continue
        est = (4 * cand * D * in_bytes
               + 2 * cand * cand * score_bytes
               + 4 * cand * cand * 4)
        if est <= vmem_budget:
            bb = cand
            break
    return bb


def nce_random_forward(ctx_output, ent_output, dual_loss=False,
                       block_b=512, score_dtype=None):
    """Pallas equivalent of NCE_Random.forward (num_gpus == 1).

    Returns (loss, acc, score) matching the PyTorch module.
    """
    B, D = ent_output.shape
    assert ctx_output.shape == (B, D)

    dtype = jnp.result_type(ctx_output.dtype, ent_output.dtype)
    ent = ent_output.astype(dtype)
    ctx = ctx_output.astype(dtype)
    score_dtype = dtype if score_dtype is None else jnp.dtype(score_dtype)

    in_bytes = jnp.dtype(dtype).itemsize
    score_bytes = jnp.dtype(score_dtype).itemsize
    bb = _pick_block(B, D, block_b, in_bytes, score_bytes)
    R = pl.cdiv(B, bb)
    ragged = (B % bb) != 0   # ragged edge blocks are masked with b_valid

    kernel = functools.partial(_nce_kernel, block_b=bb, b_valid=B,
                               dual_loss=dual_loss, ragged=ragged)

    out_specs = [
        pl.BlockSpec((bb, bb), lambda i, j: (i, j)),           # score tile
        pl.BlockSpec((1, 8, 128), lambda i, j: (i, 0, 0)),     # row partials
    ]
    out_shape = [
        jax.ShapeDtypeStruct((B, B), score_dtype),             # exact (B,B)
        jax.ShapeDtypeStruct((R, 8, 128), jnp.float32),
    ]
    if dual_loss:
        out_specs.append(
            pl.BlockSpec((1, 1, 2, bb), lambda i, j: (i, j, 0, 0)))
        out_shape.append(jax.ShapeDtypeStruct((R, R, 2, bb), jnp.float32))

    results = pl.pallas_call(
        kernel,
        grid=(R, R),
        in_specs=[
            pl.BlockSpec((bb, D), lambda i, j: (i, 0)),   # ent rows (held)
            pl.BlockSpec((bb, D), lambda i, j: (j, 0)),   # ctx rows (stream)
        ],
        out_specs=tuple(out_specs),
        out_shape=tuple(out_shape),
        scratch_shapes=[
            pltpu.VMEM((bb, 1), jnp.float32),   # running row max
            pltpu.VMEM((bb, 1), jnp.float32),   # running row sum-exp
            pltpu.VMEM((bb, 1), jnp.float32),   # diagonal (target) logits
        ],
        compiler_params=pltpu.CompilerParams(
            # Row blocks are fully independent (dual_loss column stats are
            # per-(i,j) outputs) -> megacore split on v7x; col axis is the
            # online-softmax reduction.
            dimension_semantics=("parallel", "arbitrary"),
            vmem_limit_bytes=56 * 1024 * 1024,
        ),
    )(ent, ctx)

    if dual_loss:
        score, partials, colpart = results
    else:
        score, partials = results

    row_loss_sum = jnp.sum(partials[:, 0, 0])
    correct_sum = jnp.sum(partials[:, 0, 1])
    diag_sum = jnp.sum(partials[:, 0, 2])

    loss = row_loss_sum / B
    if dual_loss:
        # Cross-row-block log-sum-exp merge of the column partials (O(R*B)).
        cmax = colpart[:, :, 0, :]                              # (Ri, Rj, bb)
        csum = colpart[:, :, 1, :]
        gmax = jnp.max(cmax, axis=0)                            # (Rj, bb)
        gsum = jnp.sum(csum * jnp.exp(cmax - gmax[None]), axis=0)
        col_lse = gmax + jnp.log(gsum)                          # (Rj, bb)
        col_ids = jnp.arange(R * bb, dtype=jnp.int32).reshape(R, bb)
        col_lse_sum = jnp.sum(jnp.where(col_ids < B, col_lse, 0.0))
        loss = loss + (col_lse_sum - diag_sum) / B
    acc = correct_sum / B
    return loss, acc, score


def _reference(ctx_output, ent_output, dual_loss=False):
    """Pure-JAX reference for numerical checking."""
    s = ent_output.astype(jnp.float32) @ ctx_output.astype(jnp.float32).T
    B = s.shape[0]
    tgt = jnp.arange(B)
    logp = jax.nn.log_softmax(s, axis=-1)
    loss = -jnp.mean(logp[jnp.arange(B), tgt])
    if dual_loss:
        logp_t = jax.nn.log_softmax(s.T, axis=-1)
        loss = loss + (-jnp.mean(logp_t[jnp.arange(B), tgt]))
    pred = jnp.argmax(s, axis=-1)
    acc = jnp.mean((pred == tgt).astype(jnp.float32))
    return loss, acc, s


if __name__ == "__main__":
    key = jax.random.PRNGKey(0)

    def check(B, D, dual, block_b, atol, rtol):
        k1, k2 = jax.random.split(jax.random.fold_in(key, B * 1000 + D))
        ctx = jax.random.normal(k1, (B, D), dtype=jnp.float32)
        ent = jax.random.normal(k2, (B, D), dtype=jnp.float32)
        loss, acc, score = nce_random_forward(ctx, ent, dual_loss=dual,
                                              block_b=block_b)
        jax.block_until_ready((loss, acc, score))
        ref_loss, ref_acc, ref_score = _reference(ctx, ent, dual_loss=dual)
        assert jnp.allclose(score, ref_score, atol=atol, rtol=rtol), (B, D, dual)
        assert jnp.allclose(loss, ref_loss, atol=atol, rtol=rtol), (B, D, dual)
        assert jnp.allclose(acc, ref_acc, atol=1e-6), (B, D, dual)

    # Small single-tile path (B < 128 rounds the block up to 128, ragged).
    check(8, 32, dual=False, block_b=512, atol=1e-4, rtol=1e-4)
    check(8, 32, dual=True, block_b=512, atol=1e-4, rtol=1e-4)
    # Multi-tile path: 3x3 grid of 128-blocks with ragged edges (B=300),
    # online softmax across col blocks, wrapper-side dual-loss column merge.
    check(300, 64, dual=True, block_b=128, atol=2e-3, rtol=2e-3)

    print("KERNEL_OK")
</pallas_src>

<mosaic_0001>
module attributes {stable_mosaic.version = 11 : i64} {
  func.func @_nce_kernel(%arg0: i32, %arg1: i32, %arg2: memref<128x32xf32, #tpu.memory_space<vmem>>, %arg3: memref<128x32xf32, #tpu.memory_space<vmem>>, %arg4: memref<128x128xf32, #tpu.memory_space<vmem>>, %arg5: memref<1x8x128xf32, #tpu.memory_space<vmem>>, %arg6: memref<128x1xf32, #tpu.memory_space<vmem>>, %arg7: memref<128x1xf32, #tpu.memory_space<vmem>>, %arg8: memref<128x1xf32, #tpu.memory_space<vmem>>) attributes {dimension_semantics = [#tpu.dimension_semantics<parallel>, #tpu.dimension_semantics<arbitrary>], iteration_bounds = array<i64: 1, 1>, scalar_prefetch = 0 : i64, scratch_operands = 3 : i64, tpu.core_type = #tpu.core_type<tc>, window_params = [{transform_indices = @transform_0, window_bounds = array<i64: 128, 32>}, {transform_indices = @transform_1, window_bounds = array<i64: 128, 32>}, {transform_indices = @transform_2, window_bounds = array<i64: 128, 128>}, {transform_indices = @transform_3, window_bounds = array<i64: 1, 8, 128>}]} {
    %c0 = arith.constant 0 : index
    %c0_0 = arith.constant 0 : index
    %0 = vector.load %arg2[%c0, %c0_0] : memref<128x32xf32, #tpu.memory_space<vmem>>, vector<128x32xf32>
    %c0_1 = arith.constant 0 : index
    %c0_2 = arith.constant 0 : index
    %1 = vector.load %arg3[%c0_1, %c0_2] : memref<128x32xf32, #tpu.memory_space<vmem>>, vector<128x32xf32>
    %cst = arith.constant dense<0.000000e+00> : vector<128x128xf32>
    %2 = tpu.matmul %0, %1, %cst {dimension_numbers = #tpu.dot_dimension_numbers<[1], [1], [0], [0], [0, 0, 1, 0], [], []>} : vector<128x32xf32>, vector<128x32xf32>, vector<128x128xf32> -> vector<128x128xf32>
    %c0_3 = arith.constant 0 : index
    %c0_4 = arith.constant 0 : index
    %3 = vector.load %arg4[%c0_3, %c0_4] : memref<128x128xf32, #tpu.memory_space<vmem>>, vector<128x128xf32>
    tpu.vector_store %arg4[%c0_3, %c0_4], %2 {strides = array<i32>} : memref<128x128xf32, #tpu.memory_space<vmem>>, vector<128x128xf32>,
    %c128_i32 = arith.constant 128 : i32
    %4 = arith.muli %arg1, %c128_i32 : i32
    %5 = tpu.iota {dimensions = array<i32: 1>} : vector<1x128xi32>
    %6 = vector.broadcast %4 : i32 to vector<1x128xi32>
    %7 = arith.addi %6, %5 : vector<1x128xi32>
    %c8_i32 = arith.constant 8 : i32
    %8 = vector.broadcast %c8_i32 : i32 to vector<1x128xi32>
    %9 = arith.cmpi slt, %7, %8 : vector<1x128xi32>
    %cst_5 = arith.constant -1.000000e+30 : f32
    %10 = vector.shape_cast %9 : vector<1x128xi1> to vector<1x128xi1>
    %11 = vector.broadcast %10 : vector<1x128xi1> to vector<128x128xi1>
    %12 = vector.broadcast %cst_5 : f32 to vector<128x128xf32>
    %13 = arith.select %11, %2, %12 : vector<128x128xi1>, vector<128x128xf32>
    %c0_i32 = arith.constant 0 : i32
    %14 = arith.cmpi eq, %arg1, %c0_i32 : i32
    %15 = arith.extui %14 : i1 to i32
    %c0_i32_6 = arith.constant 0 : i32
    %16 = arith.cmpi ne, %15, %c0_i32_6 : i32
    scf.if %16 {
      %cst_20 = arith.constant -1.000000e+30 : f32
      %39 = vector.broadcast %cst_20 : f32 to vector<128x1xf32>
      %c0_21 = arith.constant 0 : index
      %c0_22 = arith.constant 0 : index
      %40 = vector.load %arg6[%c0_21, %c0_22] : memref<128x1xf32, #tpu.memory_space<vmem>>, vector<128x1xf32>
      tpu.vector_store %arg6[%c0_21, %c0_22], %39 {strides = array<i32>} : memref<128x1xf32, #tpu.memory_space<vmem>>, vector<128x1xf32>,
      %cst_23 = arith.constant 0.000000e+00 : f32
      %41 = vector.broadcast %cst_23 : f32 to vector<128x1xf32>
      %c0_24 = arith.constant 0 : index
      %c0_25 = arith.constant 0 : index
      %42 = vector.load %arg7[%c0_24, %c0_25] : memref<128x1xf32, #tpu.memory_space<vmem>>, vector<128x1xf32>
      tpu.vector_store %arg7[%c0_24, %c0_25], %41 {strides = array<i32>} : memref<128x1xf32, #tpu.memory_space<vmem>>, vector<128x1xf32>,
      %cst_26 = arith.constant 0.000000e+00 : f32
      %43 = vector.broadcast %cst_26 : f32 to vector<128x1xf32>
      %c0_27 = arith.constant 0 : index
      %c0_28 = arith.constant 0 : index
      %44 = vector.load %arg8[%c0_27, %c0_28] : memref<128x1xf32, #tpu.memory_space<vmem>>, vector<128x1xf32>
      tpu.vector_store %arg8[%c0_27, %c0_28], %43 {strides = array<i32>} : memref<128x1xf32, #tpu.memory_space<vmem>>, vector<128x1xf32>,
    } else {
    }
    %cst_7 = arith.constant dense<0xFF800000> : vector<128xf32>
    %17 = vector.multi_reduction <maximumf>, %13, %cst_7 [1] : vector<128x128xf32> to vector<128xf32>
    %18 = vector.shape_cast %17 : vector<128xf32> to vector<128x1xf32>
    %c0_8 = arith.constant 0 : index
    %c0_9 = arith.constant 0 : index
    %19 = vector.load %arg6[%c0_8, %c0_9] : memref<128x1xf32, #tpu.memory_space<vmem>>, vector<128x1xf32>
    %20 = arith.maximumf %19, %18 : vector<128x1xf32>
    %21 = arith.subf %19, %20 : vector<128x1xf32>
    %22 = math.exp %21 : vector<128x1xf32>
    %c0_10 = arith.constant 0 : index
    %c0_11 = arith.constant 0 : index
    %23 = vector.load %arg7[%c0_10, %c0_11] : memref<128x1xf32, #tpu.memory_space<vmem>>, vector<128x1xf32>
    %24 = arith.mulf %22, %23 : vector<128x1xf32>
    %25 = vector.broadcast %20 : vector<128x1xf32> to vector<128x128xf32>
    %26 = arith.subf %13, %25 : vector<128x128xf32>
    %27 = math.exp %26 : vector<128x128xf32>
    %cst_12 = arith.constant dense<0.000000e+00> : vector<128xf32>
    %28 = vector.multi_reduction <add>, %27, %cst_12 [1] : vector<128x128xf32> to vector<128xf32>
    %29 = vector.shape_cast %28 : vector<128xf32> to vector<128x1xf32>
    %30 = arith.addf %24, %29 : vector<128x1xf32>
    %c0_13 = arith.constant 0 : index
    %c0_14 = arith.constant 0 : index
    %31 = vector.load %arg7[%c0_13, %c0_14] : memref<128x1xf32, #tpu.memory_space<vmem>>, vector<128x1xf32>
    tpu.vector_store %arg7[%c0_13, %c0_14], %30 {strides = array<i32>} : memref<128x1xf32, #tpu.memory_space<vmem>>, vector<128x1xf32>,
    %c0_15 = arith.constant 0 : index
    %c0_16 = arith.constant 0 : index
    %32 = vector.load %arg6[%c0_15, %c0_16] : memref<128x1xf32, #tpu.memory_space<vmem>>, vector<128x1xf32>
    tpu.vector_store %arg6[%c0_15, %c0_16], %20 {strides = array<i32>} : memref<128x1xf32, #tpu.memory_space<vmem>>, vector<128x1xf32>,
    %33 = arith.cmpi eq, %arg0, %arg1 : i32
    %34 = arith.extui %33 : i1 to i32
    %c0_i32_17 = arith.constant 0 : i32
    %35 = arith.cmpi ne, %34, %c0_i32_17 : i32
    scf.if %35 {
      %39 = tpu.iota {dimensions = array<i32: 0>} : vector<128x128xi32>
      %40 = tpu.iota {dimensions = array<i32: 1>} : vector<128x128xi32>
      %41 = arith.cmpi eq, %39, %40 : vector<128x128xi32>
      %cst_20 = arith.constant 0.000000e+00 : f32
      %42 = vector.broadcast %cst_20 : f32 to vector<128x128xf32>
      %43 = arith.select %41, %2, %42 : vector<128x128xi1>, vector<128x128xf32>
      %cst_21 = arith.constant dense<0.000000e+00> : vector<128xf32>
      %44 = vector.multi_reduction <add>, %43, %cst_21 [1] : vector<128x128xf32> to vector<128xf32>
      %45 = vector.shape_cast %44 : vector<128xf32> to vector<128x1xf32>
      %c0_22 = arith.constant 0 : index
      %c0_23 = arith.constant 0 : index
      %46 = vector.load %arg8[%c0_22, %c0_23] : memref<128x1xf32, #tpu.memory_space<vmem>>, vector<128x1xf32>
      tpu.vector_store %arg8[%c0_22, %c0_23], %45 {strides = array<i32>} : memref<128x1xf32, #tpu.memory_space<vmem>>, vector<128x1xf32>,
    } else {
    }
    %c0_i32_18 = arith.constant 0 : i32
    %36 = arith.cmpi eq, %arg1, %c0_i32_18 : i32
    %37 = arith.extui %36 : i1 to i32
    %c0_i32_19 = arith.constant 0 : i32
    %38 = arith.cmpi ne, %37, %c0_i32_19 : i32
    scf.if %38 {
      %c0_20 = arith.constant 0 : index
      %c0_21 = arith.constant 0 : index
      %39 = vector.load %arg6[%c0_20, %c0_21] : memref<128x1xf32, #tpu.memory_space<vmem>>, vector<128x1xf32>
      %c0_22 = arith.constant 0 : index
      %c0_23 = arith.constant 0 : index
      %40 = vector.load %arg7[%c0_22, %c0_23] : memref<128x1xf32, #tpu.memory_space<vmem>>, vector<128x1xf32>
      %41 = math.log %40 : vector<128x1xf32>
      %42 = arith.addf %39, %41 : vector<128x1xf32>
      %c0_24 = arith.constant 0 : index
      %c0_25 = arith.constant 0 : index
      %43 = vector.load %arg8[%c0_24, %c0_25] : memref<128x1xf32, #tpu.memory_space<vmem>>, vector<128x1xf32>
      %44 = arith.subf %42, %43 : vector<128x1xf32>
      %c0_26 = arith.constant 0 : index
      %c0_27 = arith.constant 0 : index
      %45 = vector.load %arg8[%c0_26, %c0_27] : memref<128x1xf32, #tpu.memory_space<vmem>>, vector<128x1xf32>
      %c0_28 = arith.constant 0 : index
      %c0_29 = arith.constant 0 : index
      %46 = vector.load %arg6[%c0_28, %c0_29] : memref<128x1xf32, #tpu.memory_space<vmem>>, vector<128x1xf32>
      %47 = arith.cmpf oge, %45, %46 : vector<128x1xf32>
      %48 = arith.extui %47 : vector<128x1xi1> to vector<128x1xi32>
      %49 = arith.sitofp %48 : vector<128x1xi32> to vector<128x1xf32>
      %c0_30 = arith.constant 0 : index
      %c0_31 = arith.constant 0 : index
      %50 = vector.load %arg8[%c0_30, %c0_31] : memref<128x1xf32, #tpu.memory_space<vmem>>, vector<128x1xf32>
      %c128_i32_32 = arith.constant 128 : i32
      %51 = arith.muli %arg0, %c128_i32_32 : i32
      %52 = tpu.iota {dimensions = array<i32: 0>} : vector<128x1xi32>
      %53 = vector.broadcast %51 : i32 to vector<128x1xi32>
      %54 = arith.addi %53, %52 : vector<128x1xi32>
      %c8_i32_33 = arith.constant 8 : i32
      %55 = vector.broadcast %c8_i32_33 : i32 to vector<128x1xi32>
      %56 = arith.cmpi slt, %54, %55 : vector<128x1xi32>
      %cst_34 = arith.constant 0.000000e+00 : f32
      %57 = vector.broadcast %cst_34 : f32 to vector<128x1xf32>
      %58 = arith.select %56, %44, %57 : vector<128x1xi1>, vector<128x1xf32>
      %cst_35 = arith.constant 0.000000e+00 : f32
      %59 = vector.broadcast %cst_35 : f32 to vector<128x1xf32>
      %60 = arith.select %56, %49, %59 : vector<128x1xi1>, vector<128x1xf32>
      %cst_36 = arith.constant 0.000000e+00 : f32
      %61 = vector.broadcast %cst_36 : f32 to vector<128x1xf32>
      %62 = arith.select %56, %50, %61 : vector<128x1xi1>, vector<128x1xf32>
      %63 = vector.shape_cast %58 : vector<128x1xf32> to vector<1x128x1xf32>
      %cst_37 = arith.constant dense<0.000000e+00> : vector<1xf32>
      %64 = vector.multi_reduction <add>, %63, %cst_37 [1, 2] : vector<1x128x1xf32> to vector<1xf32>
      %65 = vector.shape_cast %64 : vector<1xf32> to vector<1x1x1xf32>
      %66 = vector.extract %65[0, 0, 0] : f32 from vector<1x1x1xf32>
      %67 = vector.shape_cast %60 : vector<128x1xf32> to vector<1x128x1xf32>
      %cst_38 = arith.constant dense<0.000000e+00> : vector<1xf32>
      %68 = vector.multi_reduction <add>, %67, %cst_38 [1, 2] : vector<1x128x1xf32> to vector<1xf32>
      %69 = vector.shape_cast %68 : vector<1xf32> to vector<1x1x1xf32>
      %70 = vector.extract %69[0, 0, 0] : f32 from vector<1x1x1xf32>
      %71 = vector.shape_cast %62 : vector<128x1xf32> to vector<1x128x1xf32>
      %cst_39 = arith.constant dense<0.000000e+00> : vector<1xf32>
      %72 = vector.multi_reduction <add>, %71, %cst_39 [1, 2] : vector<1x128x1xf32> to vector<1xf32>
      %73 = vector.shape_cast %72 : vector<1xf32> to vector<1x1x1xf32>
      %74 = vector.extract %73[0, 0, 0] : f32 from vector<1x1x1xf32>
      %75 = tpu.iota {dimensions = array<i32: 0>} : vector<8x128xi32>
      %76 = tpu.iota {dimensions = array<i32: 1>} : vector<8x128xi32>
      %c0_i32_40 = arith.constant 0 : i32
      %77 = vector.broadcast %c0_i32_40 : i32 to vector<8x128xi32>
      %78 = arith.cmpi eq, %75, %77 : vector<8x128xi32>
      %c0_i32_41 = arith.constant 0 : i32
      %79 = vector.broadcast %c0_i32_41 : i32 to vector<8x128xi32>
      %80 = arith.cmpi eq, %76, %79 : vector<8x128xi32>
      %81 = arith.andi %78, %80 : vector<8x128xi1>
      %cst_42 = arith.constant 0.000000e+00 : f32
      %82 = vector.broadcast %cst_42 : f32 to vector<8x128xf32>
      %83 = vector.broadcast %66 : f32 to vector<8x128xf32>
      %84 = arith.select %81, %83, %82 : vector<8x128xi1>, vector<8x128xf32>
      %c0_i32_43 = arith.constant 0 : i32
      %85 = vector.broadcast %c0_i32_43 : i32 to vector<8x128xi32>
      %86 = arith.cmpi eq, %75, %85 : vector<8x128xi32>
      %c1_i32 = arith.constant 1 : i32
      %87 = vector.broadcast %c1_i32 : i32 to vector<8x128xi32>
      %88 = arith.cmpi eq, %76, %87 : vector<8x128xi32>
      %89 = arith.andi %86, %88 : vector<8x128xi1>
      %90 = vector.broadcast %70 : f32 to vector<8x128xf32>
      %91 = arith.select %89, %90, %84 : vector<8x128xi1>, vector<8x128xf32>
      %c0_i32_44 = arith.constant 0 : i32
      %92 = vector.broadcast %c0_i32_44 : i32 to vector<8x128xi32>
      %93 = arith.cmpi eq, %75, %92 : vector<8x128xi32>
      %c2_i32 = arith.constant 2 : i32
      %94 = vector.broadcast %c2_i32 : i32 to vector<8x128xi32>
      %95 = arith.cmpi eq, %76, %94 : vector<8x128xi32>
      %96 = arith.andi %93, %95 : vector<8x128xi1>
      %97 = vector.broadcast %74 : f32 to vector<8x128xf32>
      %98 = arith.select %96, %97, %91 : vector<8x128xi1>, vector<8x128xf32>
      %c0_45 = arith.constant 0 : index
      %c0_46 = arith.constant 0 : index
      %c0_47 = arith.constant 0 : index
      %99 = vector.load %arg5[%c0_45, %c0_46, %c0_47] : memref<1x8x128xf32, #tpu.memory_space<vmem>>, vector<1x8x128xf32>
      %100 = vector.shape_cast %99 : vector<1x8x128xf32> to vector<8x128xf32>
      %101 = vector.shape_cast %98 : vector<8x128xf32> to vector<1x8x128xf32>
      tpu.vector_store %arg5[%c0_45, %c0_46, %c0_47], %101 {strides = array<i32>} : memref<1x8x128xf32, #tpu.memory_space<vmem>>, vector<1x8x128xf32>,
    } else {
    }
    return
  }
  func.func @transform_0(%arg0: i32, %arg1: i32) -> (i32, i32) {
    %c0_i32 = arith.constant 0 : i32
    %c0_i32_0 = arith.constant 0 : i32
    return %arg0, %c0_i32 : i32, i32
  }
  func.func @transform_1(%arg0: i32, %arg1: i32) -> (i32, i32) {
    %c0_i32 = arith.constant 0 : i32
    %c0_i32_0 = arith.constant 0 : i32
    return %arg1, %c0_i32 : i32, i32
  }
  func.func @transform_2(%arg0: i32, %arg1: i32) -> (i32, i32) {
    %c0_i32 = arith.constant 0 : i32
    return %arg0, %arg1 : i32, i32
  }
  func.func @transform_3(%arg0: i32, %arg1: i32) -> (i32, i32, i32) {
    %c0_i32 = arith.constant 0 : i32
    %c0_i32_0 = arith.constant 0 : i32
    %c0_i32_1 = arith.constant 0 : i32
    return %arg0, %c0_i32, %c0_i32_0 : i32, i32, i32
  }
}

</mosaic_0001>

<llo_original>
// kernel: tpu_custom_call.1
$region0: #{tpu_custom_call.1}
  #allocation0 [shape = 'u32[]', space=smem, size = 0x4, offset = 0x4, fixed_abs, tag = 'smem constant byte address 0x4 - core index']
  #allocation1 [shape = 'u32[144,128]{1,0:T(1,128)}', space=vmem, size = 0x12000, scoped, tag = 'internal scratch']
  #allocation2 [shape = 'f32[128,1]{1,0:T(8,128)}', space=vmem, size = 0x10000, scoped, tag = 'scratch operand']
  #allocation3 [shape = 'f32[128,1]{1,0:T(8,128)}', space=vmem, size = 0x10000, scoped, tag = 'scratch operand']
  #allocation4 [shape = 'f32[128,1]{1,0:T(8,128)}', space=vmem, size = 0x10000, scoped, tag = 'scratch operand']
  %s0 = inlined_call_operand.hbm [shape: f32[8,32], index: 0, kind: input, shape index: {}]
  %s1 = inlined_call_operand.hbm [shape: f32[8,32], index: 1, kind: input, shape index: {}]
  %s2 = inlined_call_operand.hbm [shape: f32[8,8], index: 2, kind: output, shape index: {0}]
  %s3 = inlined_call_operand.hbm [shape: f32[1,8,128], index: 3, kind: output, shape index: {1}]
  %4 = xla_tuple %s2, %s3
  %s5 = sld [smem:[#allocation0]]
  $region46: #{tpu_custom_call.1} parent=0
    _
  %s7 = ssub.s32 1, %s5
  %s8 = scalar_select 0, %s7, %s5
  $region1: #{tpu_custom_call.1} parent=0
    #allocation5 [shape = 'u8[65536]{0}', space=vmem, size = 0x10000, scoped, tag = 'input window, operand 0, single buffered']
    #allocation6 [shape = 's32[1]{0}', space=sflag, size = 0x4, scoped, tag = 'scoped memory for tpu_custom_call.1']
    #allocation7 [shape = 's32[1]{0}', space=sflag, size = 0x4, scoped, tag = 'scoped memory for tpu_custom_call.1']
    #allocation8 [shape = 'u8[65536]{0}', space=vmem, size = 0x10000, scoped, tag = 'input window, operand 1, single buffered']
    #allocation9 [shape = 's32[1]{0}', space=sflag, size = 0x4, scoped, tag = 'scoped memory for tpu_custom_call.1']
    #allocation10 [shape = 'u8[65536]{0}', space=vmem, size = 0x10000, scoped, tag = 'output window, operand 0, single buffered']
    #allocation11 [shape = 'u8[4096]{0}', space=vmem, size = 0x1000, scoped, tag = 'output window, operand 1, single buffered']
    #allocation12 [shape = 's32[1]{0}', space=sflag, size = 0x4, scoped, tag = 'scoped memory for tpu_custom_call.1']
    %9 = vsyncpa [#allocation6], 0
    %10 = vsyncpa [#allocation9], 0
    %11 = vsyncpa [#allocation7], 0
    %12 = vsyncpa [#allocation12], 0
    // Predicated region
    $region2: #{tpu_custom_call.1} parent=1 // pred_check
      _
    $region3: #{tpu_custom_call.1} parent=1 // pred_check_branch
      %14 = sbr.rel (0) target = $region5
    $region4: #{tpu_custom_call.1} parent=1 // pred_region
      %s16 = ssub.s32 2048, 128
      %17 = vsyncadd [#allocation6], %s16
      %s18 = sshll.u32 [#allocation5], 4
      %s19 = int_to_ptr.vmem [resolvable:$true] %s18
      %24 = dma.hbm_to_vmem [thread:$0]  %s0, 128, %s19, [#allocation6], 128, 128, 8
    $region5: #{tpu_custom_call.1} parent=1 // pred_fallthru
      _
    // Predicated region
    $region6: #{tpu_custom_call.1} parent=1 // pred_check
      _
    $region7: #{tpu_custom_call.1} parent=1 // pred_check_branch
      %26 = sbr.rel (0) target = $region9
    $region8: #{tpu_custom_call.1} parent=1 // pred_region
      %s28 = ssub.s32 2048, 128
      %29 = vsyncadd [#allocation9], %s28
      %s30 = sshll.u32 [#allocation8], 4
      %s31 = int_to_ptr.vmem [resolvable:$true] %s30
      %36 = dma.hbm_to_vmem [thread:$0]  %s1, 128, %s31, [#allocation9], 128, 128, 8
    $region9: #{tpu_custom_call.1} parent=1 // pred_fallthru
      _
    // Predicated region
    $region10: #{tpu_custom_call.1} parent=1 // pred_check
      _
    $region11: #{tpu_custom_call.1} parent=1 // pred_check_branch
      %38 = sbr.rel (0) target = $region13
    $region12: #{tpu_custom_call.1} parent=1 // pred_region
      %39 = dma.done [#allocation6], 2048
    $region13: #{tpu_custom_call.1} parent=1 // pred_fallthru
      _
    // Predicated region
    $region14: #{tpu_custom_call.1} parent=1 // pred_check
      _
    $region15: #{tpu_custom_call.1} parent=1 // pred_check_branch
      %41 = sbr.rel (0) target = $region17
    $region16: #{tpu_custom_call.1} parent=1 // pred_region
      %42 = dma.done [#allocation9], 2048
    $region17: #{tpu_custom_call.1} parent=1 // pred_fallthru
      _
    %v43 = vld [vmem:[#allocation5] sm:$0xff]
    %v44 = vld [vmem:[#allocation5 + $0x8] sm:$0xff]
    %v45 = vld [vmem:[#allocation5 + $0x10] sm:$0xff]
    %v46 = vld [vmem:[#allocation5 + $0x18] sm:$0xff]
    %v47 = vld [vmem:[#allocation5 + $0x20] sm:$0xff]
    %v48 = vld [vmem:[#allocation5 + $0x28] sm:$0xff]
    %v49 = vld [vmem:[#allocation5 + $0x30] sm:$0xff]
    %v50 = vld [vmem:[#allocation5 + $0x38] sm:$0xff]
    %v51 = vld [vmem:[#allocation5 + $0x40] sm:$0xff]
    %v52 = vld [vmem:[#allocation5 + $0x48] sm:$0xff]
    %v53 = vld [vmem:[#allocation5 + $0x50] sm:$0xff]
    %v54 = vld [vmem:[#allocation5 + $0x58] sm:$0xff]
    %v55 = vld [vmem:[#allocation5 + $0x60] sm:$0xff]
    %v56 = vld [vmem:[#allocation5 + $0x68] sm:$0xff]
    %v57 = vld [vmem:[#allocation5 + $0x70] sm:$0xff]
    %v58 = vld [vmem:[#allocation5 + $0x78] sm:$0xff]
    %v59 = vld [vmem:[#allocation8] sm:$0xff]
    %v60 = vld [vmem:[#allocation8 + $0x8] sm:$0xff]
    %v61 = vld [vmem:[#allocation8 + $0x10] sm:$0xff]
    %v62 = vld [vmem:[#allocation8 + $0x18] sm:$0xff]
    %v63 = vld [vmem:[#allocation8 + $0x20] sm:$0xff]
    %v64 = vld [vmem:[#allocation8 + $0x28] sm:$0xff]
    %v65 = vld [vmem:[#allocation8 + $0x30] sm:$0xff]
    %v66 = vld [vmem:[#allocation8 + $0x38] sm:$0xff]
    %v67 = vld [vmem:[#allocation8 + $0x40] sm:$0xff]
    %v68 = vld [vmem:[#allocation8 + $0x48] sm:$0xff]
    %v69 = vld [vmem:[#allocation8 + $0x50] sm:$0xff]
    %v70 = vld [vmem:[#allocation8 + $0x58] sm:$0xff]
    %v71 = vld [vmem:[#allocation8 + $0x60] sm:$0xff]
    %v72 = vld [vmem:[#allocation8 + $0x68] sm:$0xff]
    %v73 = vld [vmem:[#allocation8 + $0x70] sm:$0xff]
    %v74 = vld [vmem:[#allocation8 + $0x78] sm:$0xff]
    %vm75 = vcmask 261120
    %v77 = vsel %vm75, %v43, 0
    %v80 = vsel %vm75, %v44, 0
    %v83 = vsel %vm75, %v45, 0
    %v86 = vsel %vm75, %v46, 0
    %v89 = vsel %vm75, %v47, 0
    %v92 = vsel %vm75, %v48, 0
    %v95 = vsel %vm75, %v49, 0
    %v98 = vsel %vm75, %v50, 0
    %v101 = vsel %vm75, %v51, 0
    %v104 = vsel %vm75, %v52, 0
    %v107 = vsel %vm75, %v53, 0
    %v110 = vsel %vm75, %v54, 0
    %v113 = vsel %vm75, %v55, 0
    %v116 = vsel %vm75, %v56, 0
    %v119 = vsel %vm75, %v57, 0
    %v122 = vsel %vm75, %v58, 0
    %v125 = vsel %vm75, %v59, 0
    %v128 = vsel %vm75, %v60, 0
    %v131 = vsel %vm75, %v61, 0
    %v134 = vsel %vm75, %v62, 0
    %v137 = vsel %vm75, %v63, 0
    %v140 = vsel %vm75, %v64, 0
    %v143 = vsel %vm75, %v65, 0
    %v146 = vsel %vm75, %v66, 0
    %v149 = vsel %vm75, %v67, 0
    %v152 = vsel %vm75, %v68, 0
    %v155 = vsel %vm75, %v69, 0
    %v158 = vsel %vm75, %v70, 0
    %v161 = vsel %vm75, %v71, 0
    %v164 = vsel %vm75, %v72, 0
    %v167 = vsel %vm75, %v73, 0
    %v170 = vsel %vm75, %v74, 0
    %172 = vmatprep.subr.mxu0 0.0
    %173 = vmatpush1.xpose.msra.mxu0 %v125
    %174 = vmatprep.subr.mxu0 0.0
    %175 = vmatpush1.xpose.msra.mxu0 %v128
    %176 = vmatprep.subr.mxu0 0.0
    %177 = vmatpush1.xpose.msra.mxu0 %v131
    %178 = vmatprep.subr.mxu0 0.0
    %179 = vmatpush1.xpose.msra.mxu0 %v134
    %180 = vmatprep.subr.mxu0 0.0
    %181 = vmatpush1.xpose.msra.mxu0 %v137
    %182 = vmatprep.subr.mxu0 0.0
    %183 = vmatpush1.xpose.msra.mxu0 %v140
    %184 = vmatprep.subr.mxu0 0.0
    %185 = vmatpush1.xpose.msra.mxu0 %v143
    %186 = vmatprep.subr.mxu0 0.0
    %187 = vmatpush1.xpose.msra.mxu0 %v146
    %188 = vmatprep.subr.mxu0 0.0
    %189 = vmatpush1.xpose.msra.mxu0 %v149
    %190 = vmatprep.subr.mxu0 0.0
    %191 = vmatpush1.xpose.msra.mxu0 %v152
    %192 = vmatprep.subr.mxu0 0.0
    %193 = vmatpush1.xpose.msra.mxu0 %v155
    %194 = vmatprep.subr.mxu0 0.0
    %195 = vmatpush1.xpose.msra.mxu0 %v158
    %196 = vmatprep.subr.mxu0 0.0
    %197 = vmatpush1.xpose.msra.mxu0 %v161
    %198 = vmatprep.subr.mxu0 0.0
    %199 = vmatpush1.xpose.msra.mxu0 %v164
    %200 = vmatprep.subr.mxu0 0.0
    %201 = vmatpush1.xpose.msra.mxu0 %v167
    %202 = vmatprep.subr.mxu0 0.0
    %203 = vmatpush1.xpose.msra.mxu0 %v170
    %204 = vmatprep.subr.mxu0 0.0
    %205 = vmatpush1.xpose.msra.mxu0 0.0
    %206 = vmatprep.subr.mxu0 0.0
    %207 = vmatpush1.xpose.msra.mxu0 0.0
    %208 = vmatprep.subr.mxu0 0.0
    %209 = vmatpush1.xpose.msra.mxu0 0.0
    %210 = vmatprep.subr.mxu0 0.0
    %211 = vmatpush1.xpose.msra.mxu0 0.0
    %212 = vmatprep.subr.mxu0 0.0
    %213 = vmatpush1.xpose.msra.mxu0 0.0
    %214 = vmatprep.subr.mxu0 0.0
    %215 = vmatpush1.xpose.msra.mxu0 0.0
    %216 = vmatprep.subr.mxu0 0.0
    %217 = vmatpush1.xpose.msra.mxu0 0.0
    %218 = vmatprep.subr.mxu0 0.0
    %219 = vmatpush1.xpose.msra.mxu0 0.0
    %220 = vmatprep.subr.mxu0 0.0
    %221 = vmatpush1.xpose.msra.mxu0 0.0
    %222 = vmatprep.subr.mxu0 0.0
    %223 = vmatpush1.xpose.msra.mxu0 0.0
    %224 = vmatprep.subr.mxu0 0.0
    %225 = vmatpush1.xpose.msra.mxu0 0.0
    %226 = vmatprep.subr.mxu0 0.0
    %227 = vmatpush1.xpose.msra.mxu0 0.0
    %228 = vmatprep.subr.mxu0 0.0
    %229 = vmatpush1.xpose.msra.mxu0 0.0
    %230 = vmatprep.subr.mxu0 0.0
    %231 = vmatpush1.xpose.msra.mxu0 0.0
    %232 = vmatprep.subr.mxu0 0.0
    %233 = vmatpush1.xpose.msra.mxu0 0.0
    %234 = vmatprep.subr.mxu0 0.0
    %235 = vmatpush1.xpose.msra.mxu0 0.0
    %236 = vmatprep.mubr.f32.mxu0 0.0
    %237 = vmatmul.mubr.f32.gmra.mrb[0].mxu0 %v77
    %v238 = vpop.f32.mrb[0].mxu0
    %v239 = vadd.f32 0.0, %v238
    %v240 = vpop.f32.mrb[0].mxu0
    %241 = vmatprep.mubr.f32.mxu0 0.0
    %242 = vmatmul.mubr.f32.gmra.mrb[0].mxu0 %v80
    %v243 = vpop.f32.mrb[0].mxu0
    %v244 = vadd.f32 0.0, %v243
    %v245 = vpop.f32.mrb[0].mxu0
    %246 = vmatprep.mubr.f32.mxu0 0.0
    %247 = vmatmul.mubr.f32.gmra.mrb[0].mxu0 %v83
    %v248 = vpop.f32.mrb[0].mxu0
    %v249 = vadd.f32 0.0, %v248
    %v250 = vpop.f32.mrb[0].mxu0
    %251 = vmatprep.mubr.f32.mxu0 0.0
    %252 = vmatmul.mubr.f32.gmra.mrb[0].mxu0 %v86
    %v253 = vpop.f32.mrb[0].mxu0
    %v254 = vadd.f32 0.0, %v253
    %v255 = vpop.f32.mrb[0].mxu0
    %256 = vmatprep.mubr.f32.mxu0 0.0
    %257 = vmatmul.mubr.f32.gmra.mrb[0].mxu0 %v89
    %v258 = vpop.f32.mrb[0].mxu0
    %v259 = vadd.f32 0.0, %v258
    %v260 = vpop.f32.mrb[0].mxu0
    %261 = vmatprep.mubr.f32.mxu0 0.0
    %262 = vmatmul.mubr.f32.gmra.mrb[0].mxu0 %v92
    %v263 = vpop.f32.mrb[0].mxu0
    %v264 = vadd.f32 0.0, %v263
    %v265 = vpop.f32.mrb[0].mxu0
    %266 = vmatprep.mubr.f32.mxu0 0.0
    %267 = vmatmul.mubr.f32.gmra.mrb[0].mxu0 %v95
    %v268 = vpop.f32.mrb[0].mxu0
    %v269 = vadd.f32 0.0, %v268
    %v270 = vpop.f32.mrb[0].mxu0
    %271 = vmatprep.mubr.f32.mxu0 0.0
    %272 = vmatmul.mubr.f32.gmra.mrb[0].mxu0 %v98
    %v273 = vpop.f32.mrb[0].mxu0
    %v274 = vadd.f32 0.0, %v273
    %v275 = vpop.f32.mrb[0].mxu0
    %276 = vmatprep.mubr.f32.mxu0 0.0
    %277 = vmatmul.mubr.f32.gmra.mrb[0].mxu0 %v101
    %v278 = vpop.f32.mrb[0].mxu0
    %v279 = vadd.f32 0.0, %v278
    %v280 = vpop.f32.mrb[0].mxu0
    %281 = vmatprep.mubr.f32.mxu0 0.0
    %282 = vmatmul.mubr.f32.gmra.mrb[0].mxu0 %v104
    %v283 = vpop.f32.mrb[0].mxu0
    %v284 = vadd.f32 0.0, %v283
    %v285 = vpop.f32.mrb[0].mxu0
    %286 = vmatprep.mubr.f32.mxu0 0.0
    %287 = vmatmul.mubr.f32.gmra.mrb[0].mxu0 %v107
    %v288 = vpop.f32.mrb[0].mxu0
    %v289 = vadd.f32 0.0, %v288
    %v290 = vpop.f32.mrb[0].mxu0
    %291 = vmatprep.mubr.f32.mxu0 0.0
    %292 = vmatmul.mubr.f32.gmra.mrb[0].mxu0 %v110
    %v293 = vpop.f32.mrb[0].mxu0
    %v294 = vadd.f32 0.0, %v293
    %v295 = vpop.f32.mrb[0].mxu0
    %296 = vmatprep.mubr.f32.mxu0 0.0
    %297 = vmatmul.mubr.f32.gmra.mrb[0].mxu0 %v113
    %v298 = vpop.f32.mrb[0].mxu0
    %v299 = vadd.f32 0.0, %v298
    %v300 = vpop.f32.mrb[0].mxu0
    %301 = vmatprep.mubr.f32.mxu0 0.0
    %302 = vmatmul.mubr.f32.gmra.mrb[0].mxu0 %v116
    %v303 = vpop.f32.mrb[0].mxu0
    %v304 = vadd.f32 0.0, %v303
    %v305 = vpop.f32.mrb[0].mxu0
    %306 = vmatprep.mubr.f32.mxu0 0.0
    %307 = vmatmul.mubr.f32.gmra.mrb[0].mxu0 %v119
    %v308 = vpop.f32.mrb[0].mxu0
    %v309 = vadd.f32 0.0, %v308
    %v310 = vpop.f32.mrb[0].mxu0
    %311 = vmatprep.mubr.f32.mxu0 0.0
    %312 = vmatmul.mubr.f32.gmra.mrb[0].mxu0 %v122
    %v313 = vpop.f32.mrb[0].mxu0
    %v314 = vadd.f32 0.0, %v313
    %v315 = vpop.f32.mrb[0].mxu0
    %316 = vdwg.mxu0
    %317 = vst [vmem:[#allocation10] sm:$0xff] %v239
    %318 = vst [vmem:[#allocation10 + $0x8] sm:$0xff] %v244
    %319 = vst [vmem:[#allocation10 + $0x10] sm:$0xff] %v249
    %320 = vst [vmem:[#allocation10 + $0x18] sm:$0xff] %v254
    %321 = vst [vmem:[#allocation10 + $0x20] sm:$0xff] %v259
    %322 = vst [vmem:[#allocation10 + $0x28] sm:$0xff] %v264
    %323 = vst [vmem:[#allocation10 + $0x30] sm:$0xff] %v269
    %324 = vst [vmem:[#allocation10 + $0x38] sm:$0xff] %v274
    %325 = vst [vmem:[#allocation10 + $0x40] sm:$0xff] %v279
    %326 = vst [vmem:[#allocation10 + $0x48] sm:$0xff] %v284
    %327 = vst [vmem:[#allocation10 + $0x50] sm:$0xff] %v289
    %328 = vst [vmem:[#allocation10 + $0x58] sm:$0xff] %v294
    %329 = vst [vmem:[#allocation10 + $0x60] sm:$0xff] %v299
    %330 = vst [vmem:[#allocation10 + $0x68] sm:$0xff] %v304
    %331 = vst [vmem:[#allocation10 + $0x70] sm:$0xff] %v309
    %332 = vst [vmem:[#allocation10 + $0x78] sm:$0xff] %v314
    %s333 = smul.u32 0, 128
    %v334 = vlaneseq
    %v335 = vand.u32 %v334, 127
    %v336 = vstv %s333
    %v337 = vadd.s32 %v336, %v335
    %vm338 = vcmp.lt.s32.totalorder %v337, 8
    %v339 = vsel %vm338, 1, 0
    %vm340 = vcmp.eq.s32.totalorder %v339, 1
    %v341 = vsel %vm340, %v239, -1e+30
    %v342 = vsel %vm340, %v244, -1e+30
    %v343 = vsel %vm340, %v249, -1e+30
    %v344 = vsel %vm340, %v254, -1e+30
    %v345 = vsel %vm340, %v259, -1e+30
    %v346 = vsel %vm340, %v264, -1e+30
    %v347 = vsel %vm340, %v269, -1e+30
    %v348 = vsel %vm340, %v274, -1e+30
    %v349 = vsel %vm340, %v279, -1e+30
    %v350 = vsel %vm340, %v284, -1e+30
    %v351 = vsel %vm340, %v289, -1e+30
    %v352 = vsel %vm340, %v294, -1e+30
    %v353 = vsel %vm340, %v299, -1e+30
    %v354 = vsel %vm340, %v304, -1e+30
    %v355 = vsel %vm340, %v309, -1e+30
    %v356 = vsel %vm340, %v314, -1e+30
    %p357 = scmp.eq.s32.totalorder 0, 0
    // Predicated region
    $region18: #{tpu_custom_call.1} parent=1 // pred_check
      %p358 = pneg %p357
    $region19: #{tpu_custom_call.1} parent=1 // pred_check_branch
      %360 = sbr.rel (%p358) target = $region21
    $region20: #{tpu_custom_call.1} parent=1 // pred_region
      %vm361 = vcmask 7168
      %362 = vst.msk [vmem:[#allocation2] sm:$0xff] %vm361, -1e+30
      %363 = vst.msk [vmem:[#allocation2 + $0x8] sm:$0xff] %vm361, -1e+30
      %364 = vst.msk [vmem:[#allocation2 + $0x10] sm:$0xff] %vm361, -1e+30
      %365 = vst.msk [vmem:[#allocation2 + $0x18] sm:$0xff] %vm361, -1e+30
      %366 = vst.msk [vmem:[#allocation2 + $0x20] sm:$0xff] %vm361, -1e+30
      %367 = vst.msk [vmem:[#allocation2 + $0x28] sm:$0xff] %vm361, -1e+30
      %368 = vst.msk [vmem:[#allocation2 + $0x30] sm:$0xff] %vm361, -1e+30
      %369 = vst.msk [vmem:[#allocation2 + $0x38] sm:$0xff] %vm361, -1e+30
      %370 = vst.msk [vmem:[#allocation2 + $0x40] sm:$0xff] %vm361, -1e+30
      %371 = vst.msk [vmem:[#allocation2 + $0x48] sm:$0xff] %vm361, -1e+30
      %372 = vst.msk [vmem:[#allocation2 + $0x50] sm:$0xff] %vm361, -1e+30
      %373 = vst.msk [vmem:[#allocation2 + $0x58] sm:$0xff] %vm361, -1e+30
      %374 = vst.msk [vmem:[#allocation2 + $0x60] sm:$0xff] %vm361, -1e+30
      %375 = vst.msk [vmem:[#allocation2 + $0x68] sm:$0xff] %vm361, -1e+30
      %376 = vst.msk [vmem:[#allocation2 + $0x70] sm:$0xff] %vm361, -1e+30
      %377 = vst.msk [vmem:[#allocation2 + $0x78] sm:$0xff] %vm361, -1e+30
      %378 = vst.msk [vmem:[#allocation3] sm:$0xff] %vm361, 0.0
      %379 = vst.msk [vmem:[#allocation3 + $0x8] sm:$0xff] %vm361, 0.0
      %380 = vst.msk [vmem:[#allocation3 + $0x10] sm:$0xff] %vm361, 0.0
      %381 = vst.msk [vmem:[#allocation3 + $0x18] sm:$0xff] %vm361, 0.0
      %382 = vst.msk [vmem:[#allocation3 + $0x20] sm:$0xff] %vm361, 0.0
      %383 = vst.msk [vmem:[#allocation3 + $0x28] sm:$0xff] %vm361, 0.0
      %384 = vst.msk [vmem:[#allocation3 + $0x30] sm:$0xff] %vm361, 0.0
      %385 = vst.msk [vmem:[#allocation3 + $0x38] sm:$0xff] %vm361, 0.0
      %386 = vst.msk [vmem:[#allocation3 + $0x40] sm:$0xff] %vm361, 0.0
      %387 = vst.msk [vmem:[#allocation3 + $0x48] sm:$0xff] %vm361, 0.0
      %388 = vst.msk [vmem:[#allocation3 + $0x50] sm:$0xff] %vm361, 0.0
      %389 = vst.msk [vmem:[#allocation3 + $0x58] sm:$0xff] %vm361, 0.0
      %390 = vst.msk [vmem:[#allocation3 + $0x60] sm:$0xff] %vm361, 0.0
      %391 = vst.msk [vmem:[#allocation3 + $0x68] sm:$0xff] %vm361, 0.0
      %392 = vst.msk [vmem:[#allocation3 + $0x70] sm:$0xff] %vm361, 0.0
      %393 = vst.msk [vmem:[#allocation3 + $0x78] sm:$0xff] %vm361, 0.0
      %394 = vst.msk [vmem:[#allocation4] sm:$0xff] %vm361, 0.0
      %395 = vst.msk [vmem:[#allocation4 + $0x8] sm:$0xff] %vm361, 0.0
      %396 = vst.msk [vmem:[#allocation4 + $0x10] sm:$0xff] %vm361, 0.0
      %397 = vst.msk [vmem:[#allocation4 + $0x18] sm:$0xff] %vm361, 0.0
      %398 = vst.msk [vmem:[#allocation4 + $0x20] sm:$0xff] %vm361, 0.0
      %399 = vst.msk [vmem:[#allocation4 + $0x28] sm:$0xff] %vm361, 0.0
      %400 = vst.msk [vmem:[#allocation4 + $0x30] sm:$0xff] %vm361, 0.0
      %401 = vst.msk [vmem:[#allocation4 + $0x38] sm:$0xff] %vm361, 0.0
      %402 = vst.msk [vmem:[#allocation4 + $0x40] sm:$0xff] %vm361, 0.0
      %403 = vst.msk [vmem:[#allocation4 + $0x48] sm:$0xff] %vm361, 0.0
      %404 = vst.msk [vmem:[#allocation4 + $0x50] sm:$0xff] %vm361, 0.0
      %405 = vst.msk [vmem:[#allocation4 + $0x58] sm:$0xff] %vm361, 0.0
      %406 = vst.msk [vmem:[#allocation4 + $0x60] sm:$0xff] %vm361, 0.0
      %407 = vst.msk [vmem:[#allocation4 + $0x68] sm:$0xff] %vm361, 0.0
      %408 = vst.msk [vmem:[#allocation4 + $0x70] sm:$0xff] %vm361, 0.0
      %409 = vst.msk [vmem:[#allocation4 + $0x78] sm:$0xff] %vm361, 0.0
    $region21: #{tpu_custom_call.1} parent=1 // pred_fallthru
      _
    %410 = vmax.xlane.f32.xlu0 %v341
    %v411 = vpop.xlane.xlu0 %410
    %412 = vmax.xlane.f32.xlu0 %v342
    %v413 = vpop.xlane.xlu0 %412
    %414 = vmax.xlane.f32.xlu0 %v343
    %v415 = vpop.xlane.xlu0 %414
    %416 = vmax.xlane.f32.xlu0 %v344
    %v417 = vpop.xlane.xlu0 %416
    %418 = vmax.xlane.f32.xlu0 %v345
    %v419 = vpop.xlane.xlu0 %418
    %420 = vmax.xlane.f32.xlu0 %v346
    %v421 = vpop.xlane.xlu0 %420
    %422 = vmax.xlane.f32.xlu0 %v347
    %v423 = vpop.xlane.xlu0 %422
    %424 = vmax.xlane.f32.xlu0 %v348
    %v425 = vpop.xlane.xlu0 %424
    %426 = vmax.xlane.f32.xlu0 %v349
    %v427 = vpop.xlane.xlu0 %426
    %428 = vmax.xlane.f32.xlu0 %v350
    %v429 = vpop.xlane.xlu0 %428
    %430 = vmax.xlane.f32.xlu0 %v351
    %v431 = vpop.xlane.xlu0 %430
    %432 = vmax.xlane.f32.xlu0 %v352
    %v433 = vpop.xlane.xlu0 %432
    %434 = vmax.xlane.f32.xlu0 %v353
    %v435 = vpop.xlane.xlu0 %434
    %436 = vmax.xlane.f32.xlu0 %v354
    %v437 = vpop.xlane.xlu0 %436
    %438 = vmax.xlane.f32.xlu0 %v355
    %v439 = vpop.xlane.xlu0 %438
    %440 = vmax.xlane.f32.xlu0 %v356
    %v441 = vpop.xlane.xlu0 %440
    %v442 = vld [vmem:[#allocation2] sm:$0xff]
    %v443 = vld [vmem:[#allocation2 + $0x8] sm:$0xff]
    %v444 = vld [vmem:[#allocation2 + $0x10] sm:$0xff]
    %v445 = vld [vmem:[#allocation2 + $0x18] sm:$0xff]
    %v446 = vld [vmem:[#allocation2 + $0x20] sm:$0xff]
    %v447 = vld [vmem:[#allocation2 + $0x28] sm:$0xff]
    %v448 = vld [vmem:[#allocation2 + $0x30] sm:$0xff]
    %v449 = vld [vmem:[#allocation2 + $0x38] sm:$0xff]
    %v450 = vld [vmem:[#allocation2 + $0x40] sm:$0xff]
    %v451 = vld [vmem:[#allocation2 + $0x48] sm:$0xff]
    %v452 = vld [vmem:[#allocation2 + $0x50] sm:$0xff]
    %v453 = vld [vmem:[#allocation2 + $0x58] sm:$0xff]
    %v454 = vld [vmem:[#allocation2 + $0x60] sm:$0xff]
    %v455 = vld [vmem:[#allocation2 + $0x68] sm:$0xff]
    %v456 = vld [vmem:[#allocation2 + $0x70] sm:$0xff]
    %v457 = vld [vmem:[#allocation2 + $0x78] sm:$0xff]
    %v458 = vmax.f32 %v442, %v411
    %v459 = vmax.f32 %v443, %v413
    %v460 = vmax.f32 %v444, %v415
    %v461 = vmax.f32 %v445, %v417
    %v462 = vmax.f32 %v446, %v419
    %v463 = vmax.f32 %v447, %v421
    %v464 = vmax.f32 %v448, %v423
    %v465 = vmax.f32 %v449, %v425
    %v466 = vmax.f32 %v450, %v427
    %v467 = vmax.f32 %v451, %v429
    %v468 = vmax.f32 %v452, %v431
    %v469 = vmax.f32 %v453, %v433
    %v470 = vmax.f32 %v454, %v435
    %v471 = vmax.f32 %v455, %v437
    %v472 = vmax.f32 %v456, %v439
    %v473 = vmax.f32 %v457, %v441
    %v474 = vsub.f32 %v442, %v458
    %v475 = vsub.f32 %v443, %v459
    %v476 = vsub.f32 %v444, %v460
    %v477 = vsub.f32 %v445, %v461
    %v478 = vsub.f32 %v446, %v462
    %v479 = vsub.f32 %v447, %v463
    %v480 = vsub.f32 %v448, %v464
    %v481 = vsub.f32 %v449, %v465
    %v482 = vsub.f32 %v450, %v466
    %v483 = vsub.f32 %v451, %v467
    %v484 = vsub.f32 %v452, %v468
    %v485 = vsub.f32 %v453, %v469
    %v486 = vsub.f32 %v454, %v470
    %v487 = vsub.f32 %v455, %v471
    %v488 = vsub.f32 %v456, %v472
    %v489 = vsub.f32 %v457, %v473
    %v490 = vmul.f32 %v474, 1.442695
    %v491 = vpow.pop %v490
    %v492 = vmul.f32 %v475, 1.442695
    %v493 = vpow.pop %v492
    %v494 = vmul.f32 %v476, 1.442695
    %v495 = vpow.pop %v494
    %v496 = vmul.f32 %v477, 1.442695
    %v497 = vpow.pop %v496
    %v498 = vmul.f32 %v478, 1.442695
    %v499 = vpow.pop %v498
    %v500 = vmul.f32 %v479, 1.442695
    %v501 = vpow.pop %v500
    %v502 = vmul.f32 %v480, 1.442695
    %v503 = vpow.pop %v502
    %v504 = vmul.f32 %v481, 1.442695
    %v505 = vpow.pop %v504
    %v506 = vmul.f32 %v482, 1.442695
    %v507 = vpow.pop %v506
    %v508 = vmul.f32 %v483, 1.442695
    %v509 = vpow.pop %v508
    %v510 = vmul.f32 %v484, 1.442695
    %v511 = vpow.pop %v510
    %v512 = vmul.f32 %v485, 1.442695
    %v513 = vpow.pop %v512
    %v514 = vmul.f32 %v486, 1.442695
    %v515 = vpow.pop %v514
    %v516 = vmul.f32 %v487, 1.442695
    %v517 = vpow.pop %v516
    %v518 = vmul.f32 %v488, 1.442695
    %v519 = vpow.pop %v518
    %v520 = vmul.f32 %v489, 1.442695
    %v521 = vpow.pop %v520
    %v522 = vld [vmem:[#allocation3] sm:$0xff]
    %v523 = vld [vmem:[#allocation3 + $0x8] sm:$0xff]
    %v524 = vld [vmem:[#allocation3 + $0x10] sm:$0xff]
    %v525 = vld [vmem:[#allocation3 + $0x18] sm:$0xff]
    %v526 = vld [vmem:[#allocation3 + $0x20] sm:$0xff]
    %v527 = vld [vmem:[#allocation3 + $0x28] sm:$0xff]
    %v528 = vld [vmem:[#allocation3 + $0x30] sm:$0xff]
    %v529 = vld [vmem:[#allocation3 + $0x38] sm:$0xff]
    %v530 = vld [vmem:[#allocation3 + $0x40] sm:$0xff]
    %v531 = vld [vmem:[#allocation3 + $0x48] sm:$0xff]
    %v532 = vld [vmem:[#allocation3 + $0x50] sm:$0xff]
    %v533 = vld [vmem:[#allocation3 + $0x58] sm:$0xff]
    %v534 = vld [vmem:[#allocation3 + $0x60] sm:$0xff]
    %v535 = vld [vmem:[#allocation3 + $0x68] sm:$0xff]
    %v536 = vld [vmem:[#allocation3 + $0x70] sm:$0xff]
    %v537 = vld [vmem:[#allocation3 + $0x78] sm:$0xff]
    %v538 = vmul.f32 %v491, %v522
    %v539 = vmul.f32 %v493, %v523
    %v540 = vmul.f32 %v495, %v524
    %v541 = vmul.f32 %v497, %v525
    %v542 = vmul.f32 %v499, %v526
    %v543 = vmul.f32 %v501, %v527
    %v544 = vmul.f32 %v503, %v528
    %v545 = vmul.f32 %v505, %v529
    %v546 = vmul.f32 %v507, %v530
    %v547 = vmul.f32 %v509, %v531
    %v548 = vmul.f32 %v511, %v532
    %v549 = vmul.f32 %v513, %v533
    %v550 = vmul.f32 %v515, %v534
    %v551 = vmul.f32 %v517, %v535
    %v552 = vmul.f32 %v519, %v536
    %v553 = vmul.f32 %v521, %v537
    %555 = vset.pattern.permute.xlu0 0
    %556 = vperm.xlu0 %555, %v458
    %v557 = vpop.permute.xlu0 %556
    %560 = vset.pattern.permute.xlu0 0
    %561 = vperm.xlu0 %560, %v459
    %v562 = vpop.permute.xlu0 %561
    %565 = vset.pattern.permute.xlu0 0
    %566 = vperm.xlu0 %565, %v460
    %v567 = vpop.permute.xlu0 %566
    %570 = vset.pattern.permute.xlu0 0
    %571 = vperm.xlu0 %570, %v461
    %v572 = vpop.permute.xlu0 %571
    %575 = vset.pattern.permute.xlu0 0
    %576 = vperm.xlu0 %575, %v462
    %v577 = vpop.permute.xlu0 %576
    %580 = vset.pattern.permute.xlu0 0
    %581 = vperm.xlu0 %580, %v463
    %v582 = vpop.permute.xlu0 %581
    %585 = vset.pattern.permute.xlu0 0
    %586 = vperm.xlu0 %585, %v464
    %v587 = vpop.permute.xlu0 %586
    %590 = vset.pattern.permute.xlu0 0
    %591 = vperm.xlu0 %590, %v465
    %v592 = vpop.permute.xlu0 %591
    %595 = vset.pattern.permute.xlu0 0
    %596 = vperm.xlu0 %595, %v466
    %v597 = vpop.permute.xlu0 %596
    %600 = vset.pattern.permute.xlu0 0
    %601 = vperm.xlu0 %600, %v467
    %v602 = vpop.permute.xlu0 %601
    %605 = vset.pattern.permute.xlu0 0
    %606 = vperm.xlu0 %605, %v468
    %v607 = vpop.permute.xlu0 %606
    %610 = vset.pattern.permute.xlu0 0
    %611 = vperm.xlu0 %610, %v469
    %v612 = vpop.permute.xlu0 %611
    %615 = vset.pattern.permute.xlu0 0
    %616 = vperm.xlu0 %615, %v470
    %v617 = vpop.permute.xlu0 %616
    %620 = vset.pattern.permute.xlu0 0
    %621 = vperm.xlu0 %620, %v471
    %v622 = vpop.permute.xlu0 %621
    %625 = vset.pattern.permute.xlu0 0
    %626 = vperm.xlu0 %625, %v472
    %v627 = vpop.permute.xlu0 %626
    %630 = vset.pattern.permute.xlu0 0
    %631 = vperm.xlu0 %630, %v473
    %v632 = vpop.permute.xlu0 %631
    %v634 = vsub.f32 %v341, %v557
    %v635 = vsub.f32 %v342, %v562
    %v636 = vsub.f32 %v343, %v567
    %v637 = vsub.f32 %v344, %v572
    %v638 = vsub.f32 %v345, %v577
    %v639 = vsub.f32 %v346, %v582
    %v640 = vsub.f32 %v347, %v587
    %v641 = vsub.f32 %v348, %v592
    %v642 = vsub.f32 %v349, %v597
    %v643 = vsub.f32 %v350, %v602
    %v644 = vsub.f32 %v351, %v607
    %v645 = vsub.f32 %v352, %v612
    %v646 = vsub.f32 %v353, %v617
    %v647 = vsub.f32 %v354, %v622
    %v648 = vsub.f32 %v355, %v627
    %v649 = vsub.f32 %v356, %v632
    %v650 = vmul.f32 %v634, 1.442695
    %v651 = vpow.pop %v650
    %v652 = vmul.f32 %v635, 1.442695
    %v653 = vpow.pop %v652
    %v654 = vmul.f32 %v636, 1.442695
    %v655 = vpow.pop %v654
    %v656 = vmul.f32 %v637, 1.442695
    %v657 = vpow.pop %v656
    %v658 = vmul.f32 %v638, 1.442695
    %v659 = vpow.pop %v658
    %v660 = vmul.f32 %v639, 1.442695
    %v661 = vpow.pop %v660
    %v662 = vmul.f32 %v640, 1.442695
    %v663 = vpow.pop %v662
    %v664 = vmul.f32 %v641, 1.442695
    %v665 = vpow.pop %v664
    %v666 = vmul.f32 %v642, 1.442695
    %v667 = vpow.pop %v666
    %v668 = vmul.f32 %v643, 1.442695
    %v669 = vpow.pop %v668
    %v670 = vmul.f32 %v644, 1.442695
    %v671 = vpow.pop %v670
    %v672 = vmul.f32 %v645, 1.442695
    %v673 = vpow.pop %v672
    %v674 = vmul.f32 %v646, 1.442695
    %v675 = vpow.pop %v674
    %v676 = vmul.f32 %v647, 1.442695
    %v677 = vpow.pop %v676
    %v678 = vmul.f32 %v648, 1.442695
    %v679 = vpow.pop %v678
    %v680 = vmul.f32 %v649, 1.442695
    %v681 = vpow.pop %v680
    %682 = vadd.xlane.f32.xlu0 %v651
    %v683 = vpop.xlane.xlu0 %682
    %684 = vadd.xlane.f32.xlu0 %v653
    %v685 = vpop.xlane.xlu0 %684
    %686 = vadd.xlane.f32.xlu0 %v655
    %v687 = vpop.xlane.xlu0 %686
    %688 = vadd.xlane.f32.xlu0 %v657
    %v689 = vpop.xlane.xlu0 %688
    %690 = vadd.xlane.f32.xlu0 %v659
    %v691 = vpop.xlane.xlu0 %690
    %692 = vadd.xlane.f32.xlu0 %v661
    %v693 = vpop.xlane.xlu0 %692
    %694 = vadd.xlane.f32.xlu0 %v663
    %v695 = vpop.xlane.xlu0 %694
    %696 = vadd.xlane.f32.xlu0 %v665
    %v697 = vpop.xlane.xlu0 %696
    %698 = vadd.xlane.f32.xlu0 %v667
    %v699 = vpop.xlane.xlu0 %698
    %700 = vadd.xlane.f32.xlu0 %v669
    %v701 = vpop.xlane.xlu0 %700
    %702 = vadd.xlane.f32.xlu0 %v671
    %v703 = vpop.xlane.xlu0 %702
    %704 = vadd.xlane.f32.xlu0 %v673
    %v705 = vpop.xlane.xlu0 %704
    %706 = vadd.xlane.f32.xlu0 %v675
    %v707 = vpop.xlane.xlu0 %706
    %708 = vadd.xlane.f32.xlu0 %v677
    %v709 = vpop.xlane.xlu0 %708
    %710 = vadd.xlane.f32.xlu0 %v679
    %v711 = vpop.xlane.xlu0 %710
    %712 = vadd.xlane.f32.xlu0 %v681
    %v713 = vpop.xlane.xlu0 %712
    %v714 = vadd.f32 %v538, %v683
    %v715 = vadd.f32 %v539, %v685
    %v716 = vadd.f32 %v540, %v687
    %v717 = vadd.f32 %v541, %v689
    %v718 = vadd.f32 %v542, %v691
    %v719 = vadd.f32 %v543, %v693
    %v720 = vadd.f32 %v544, %v695
    %v721 = vadd.f32 %v545, %v697
    %v722 = vadd.f32 %v546, %v699
    %v723 = vadd.f32 %v547, %v701
    %v724 = vadd.f32 %v548, %v703
    %v725 = vadd.f32 %v549, %v705
    %v726 = vadd.f32 %v550, %v707
    %v727 = vadd.f32 %v551, %v709
    %v728 = vadd.f32 %v552, %v711
    %v729 = vadd.f32 %v553, %v713
    %vm730 = vcmask 7168
    %731 = vst.msk [vmem:[#allocation3] sm:$0xff] %vm730, %v714
    %732 = vst.msk [vmem:[#allocation3 + $0x8] sm:$0xff] %vm730, %v715
    %733 = vst.msk [vmem:[#allocation3 + $0x10] sm:$0xff] %vm730, %v716
    %734 = vst.msk [vmem:[#allocation3 + $0x18] sm:$0xff] %vm730, %v717
    %735 = vst.msk [vmem:[#allocation3 + $0x20] sm:$0xff] %vm730, %v718
    %736 = vst.msk [vmem:[#allocation3 + $0x28] sm:$0xff] %vm730, %v719
    %737 = vst.msk [vmem:[#allocation3 + $0x30] sm:$0xff] %vm730, %v720
    %738 = vst.msk [vmem:[#allocation3 + $0x38] sm:$0xff] %vm730, %v721
    %739 = vst.msk [vmem:[#allocation3 + $0x40] sm:$0xff] %vm730, %v722
    %740 = vst.msk [vmem:[#allocation3 + $0x48] sm:$0xff] %vm730, %v723
    %741 = vst.msk [vmem:[#allocation3 + $0x50] sm:$0xff] %vm730, %v724
    %742 = vst.msk [vmem:[#allocation3 + $0x58] sm:$0xff] %vm730, %v725
    %743 = vst.msk [vmem:[#allocation3 + $0x60] sm:$0xff] %vm730, %v726
    %744 = vst.msk [vmem:[#allocation3 + $0x68] sm:$0xff] %vm730, %v727
    %745 = vst.msk [vmem:[#allocation3 + $0x70] sm:$0xff] %vm730, %v728
    %746 = vst.msk [vmem:[#allocation3 + $0x78] sm:$0xff] %vm730, %v729
    %747 = vst.msk [vmem:[#allocation2] sm:$0xff] %vm730, %v458
    %748 = vst.msk [vmem:[#allocation2 + $0x8] sm:$0xff] %vm730, %v459
    %749 = vst.msk [vmem:[#allocation2 + $0x10] sm:$0xff] %vm730, %v460
    %750 = vst.msk [vmem:[#allocation2 + $0x18] sm:$0xff] %vm730, %v461
    %751 = vst.msk [vmem:[#allocation2 + $0x20] sm:$0xff] %vm730, %v462
    %752 = vst.msk [vmem:[#allocation2 + $0x28] sm:$0xff] %vm730, %v463
    %753 = vst.msk [vmem:[#allocation2 + $0x30] sm:$0xff] %vm730, %v464
    %754 = vst.msk [vmem:[#allocation2 + $0x38] sm:$0xff] %vm730, %v465
    %755 = vst.msk [vmem:[#allocation2 + $0x40] sm:$0xff] %vm730, %v466
    %756 = vst.msk [vmem:[#allocation2 + $0x48] sm:$0xff] %vm730, %v467
    %757 = vst.msk [vmem:[#allocation2 + $0x50] sm:$0xff] %vm730, %v468
    %758 = vst.msk [vmem:[#allocation2 + $0x58] sm:$0xff] %vm730, %v469
    %759 = vst.msk [vmem:[#allocation2 + $0x60] sm:$0xff] %vm730, %v470
    %760 = vst.msk [vmem:[#allocation2 + $0x68] sm:$0xff] %vm730, %v471
    %761 = vst.msk [vmem:[#allocation2 + $0x70] sm:$0xff] %vm730, %v472
    %762 = vst.msk [vmem:[#allocation2 + $0x78] sm:$0xff] %vm730, %v473
    %p763 = scmp.eq.s32.totalorder 0, 0
    // Predicated region
    $region22: #{tpu_custom_call.1} parent=1 // pred_check
      %p764 = pneg %p763
    $region23: #{tpu_custom_call.1} parent=1 // pred_check_branch
      %766 = sbr.rel (%p764) target = $region25
    $region24: #{tpu_custom_call.1} parent=1 // pred_region
      %v767 = vlaneseq
      %v768 = vshrl.u32 %v767, 7
      %v769 = vadd.s32 %v768, 8
      %v770 = vadd.s32 %v768, 16
      %v771 = vadd.s32 %v768, 24
      %v772 = vadd.s32 %v768, 32
      %v773 = vadd.s32 %v768, 40
      %v774 = vadd.s32 %v768, 48
      %v775 = vadd.s32 %v768, 56
      %v776 = vadd.s32 %v768, 64
      %v777 = vadd.s32 %v768, 72
      %v778 = vadd.s32 %v768, 80
      %v779 = vadd.s32 %v768, 88
      %v780 = vadd.s32 %v768, 96
      %v781 = vadd.s32 %v768, 104
      %v782 = vadd.s32 %v768, 112
      %v783 = vadd.s32 %v768, 120
      %vm784 = vcmp.eq.s32.totalorder %v768, %v335
      %vm785 = vcmp.eq.s32.totalorder %v769, %v335
      %vm786 = vcmp.eq.s32.totalorder %v770, %v335
      %vm787 = vcmp.eq.s32.totalorder %v771, %v335
      %vm788 = vcmp.eq.s32.totalorder %v772, %v335
      %vm789 = vcmp.eq.s32.totalorder %v773, %v335
      %vm790 = vcmp.eq.s32.totalorder %v774, %v335
      %vm791 = vcmp.eq.s32.totalorder %v775, %v335
      %vm792 = vcmp.eq.s32.totalorder %v776, %v335
      %vm793 = vcmp.eq.s32.totalorder %v777, %v335
      %vm794 = vcmp.eq.s32.totalorder %v778, %v335
      %vm795 = vcmp.eq.s32.totalorder %v779, %v335
      %vm796 = vcmp.eq.s32.totalorder %v780, %v335
      %vm797 = vcmp.eq.s32.totalorder %v781, %v335
      %vm798 = vcmp.eq.s32.totalorder %v782, %v335
      %vm799 = vcmp.eq.s32.totalorder %v783, %v335
      %v800 = vsel %vm784, %v239, 0.0
      %v801 = vsel %vm785, %v244, 0.0
      %v802 = vsel %vm786, %v249, 0.0
      %v803 = vsel %vm787, %v254, 0.0
      %v804 = vsel %vm788, %v259, 0.0
      %v805 = vsel %vm789, %v264, 0.0
      %v806 = vsel %vm790, %v269, 0.0
      %v807 = vsel %vm791, %v274, 0.0
      %v808 = vsel %vm792, %v279, 0.0
      %v809 = vsel %vm793, %v284, 0.0
      %v810 = vsel %vm794, %v289, 0.0
      %v811 = vsel %vm795, %v294, 0.0
      %v812 = vsel %vm796, %v299, 0.0
      %v813 = vsel %vm797, %v304, 0.0
      %v814 = vsel %vm798, %v309, 0.0
      %v815 = vsel %vm799, %v314, 0.0
      %816 = vadd.xlane.f32.xlu0 %v800
      %v817 = vpop.xlane.xlu0 %816
      %818 = vadd.xlane.f32.xlu0 %v801
      %v819 = vpop.xlane.xlu0 %818
      %820 = vadd.xlane.f32.xlu0 %v802
      %v821 = vpop.xlane.xlu0 %820
      %822 = vadd.xlane.f32.xlu0 %v803
      %v823 = vpop.xlane.xlu0 %822
      %824 = vadd.xlane.f32.xlu0 %v804
      %v825 = vpop.xlane.xlu0 %824
      %826 = vadd.xlane.f32.xlu0 %v805
      %v827 = vpop.xlane.xlu0 %826
      %828 = vadd.xlane.f32.xlu0 %v806
      %v829 = vpop.xlane.xlu0 %828
      %830 = vadd.xlane.f32.xlu0 %v807
      %v831 = vpop.xlane.xlu0 %830
      %832 = vadd.xlane.f32.xlu0 %v808
      %v833 = vpop.xlane.xlu0 %832
      %834 = vadd.xlane.f32.xlu0 %v809
      %v835 = vpop.xlane.xlu0 %834
      %836 = vadd.xlane.f32.xlu0 %v810
      %v837 = vpop.xlane.xlu0 %836
      %838 = vadd.xlane.f32.xlu0 %v811
      %v839 = vpop.xlane.xlu0 %838
      %840 = vadd.xlane.f32.xlu0 %v812
      %v841 = vpop.xlane.xlu0 %840
      %842 = vadd.xlane.f32.xlu0 %v813
      %v843 = vpop.xlane.xlu0 %842
      %844 = vadd.xlane.f32.xlu0 %v814
      %v845 = vpop.xlane.xlu0 %844
      %846 = vadd.xlane.f32.xlu0 %v815
      %v847 = vpop.xlane.xlu0 %846
      %848 = vst.msk [vmem:[#allocation4] sm:$0xff] %vm730, %v817
      %849 = vst.msk [vmem:[#allocation4 + $0x8] sm:$0xff] %vm730, %v819
      %850 = vst.msk [vmem:[#allocation4 + $0x10] sm:$0xff] %vm730, %v821
      %851 = vst.msk [vmem:[#allocation4 + $0x18] sm:$0xff] %vm730, %v823
      %852 = vst.msk [vmem:[#allocation4 + $0x20] sm:$0xff] %vm730, %v825
      %853 = vst.msk [vmem:[#allocation4 + $0x28] sm:$0xff] %vm730, %v827
      %854 = vst.msk [vmem:[#allocation4 + $0x30] sm:$0xff] %vm730, %v829
      %855 = vst.msk [vmem:[#allocation4 + $0x38] sm:$0xff] %vm730, %v831
      %856 = vst.msk [vmem:[#allocation4 + $0x40] sm:$0xff] %vm730, %v833
      %857 = vst.msk [vmem:[#allocation4 + $0x48] sm:$0xff] %vm730, %v835
      %858 = vst.msk [vmem:[#allocation4 + $0x50] sm:$0xff] %vm730, %v837
      %859 = vst.msk [vmem:[#allocation4 + $0x58] sm:$0xff] %vm730, %v839
      %860 = vst.msk [vmem:[#allocation4 + $0x60] sm:$0xff] %vm730, %v841
      %861 = vst.msk [vmem:[#allocation4 + $0x68] sm:$0xff] %vm730, %v843
      %862 = vst.msk [vmem:[#allocation4 + $0x70] sm:$0xff] %vm730, %v845
      %863 = vst.msk [vmem:[#allocation4 + $0x78] sm:$0xff] %vm730, %v847
    $region25: #{tpu_custom_call.1} parent=1 // pred_fallthru
      _
    // Predicated region
    $region26: #{tpu_custom_call.1} parent=1 // pred_check
      %p864 = pneg %p357
    $region27: #{tpu_custom_call.1} parent=1 // pred_check_branch
      %866 = sbr.rel (%p864) target = $region29
    $region28: #{tpu_custom_call.1} parent=1 // pred_region
      %v867 = vld [vmem:[#allocation2] sm:$0xff]
      %v868 = vld [vmem:[#allocation2 + $0x8] sm:$0xff]
      %v869 = vld [vmem:[#allocation2 + $0x10] sm:$0xff]
      %v870 = vld [vmem:[#allocation2 + $0x18] sm:$0xff]
      %v871 = vld [vmem:[#allocation2 + $0x20] sm:$0xff]
      %v872 = vld [vmem:[#allocation2 + $0x28] sm:$0xff]
      %v873 = vld [vmem:[#allocation2 + $0x30] sm:$0xff]
      %v874 = vld [vmem:[#allocation2 + $0x38] sm:$0xff]
      %v875 = vld [vmem:[#allocation2 + $0x40] sm:$0xff]
      %v876 = vld [vmem:[#allocation2 + $0x48] sm:$0xff]
      %v877 = vld [vmem:[#allocation2 + $0x50] sm:$0xff]
      %v878 = vld [vmem:[#allocation2 + $0x58] sm:$0xff]
      %v879 = vld [vmem:[#allocation2 + $0x60] sm:$0xff]
      %v880 = vld [vmem:[#allocation2 + $0x68] sm:$0xff]
      %v881 = vld [vmem:[#allocation2 + $0x70] sm:$0xff]
      %v882 = vld [vmem:[#allocation2 + $0x78] sm:$0xff]
      %v883 = vld [vmem:[#allocation3] sm:$0xff]
      %v884 = vld [vmem:[#allocation3 + $0x8] sm:$0xff]
      %v885 = vld [vmem:[#allocation3 + $0x10] sm:$0xff]
      %v886 = vld [vmem:[#allocation3 + $0x18] sm:$0xff]
      %v887 = vld [vmem:[#allocation3 + $0x20] sm:$0xff]
      %v888 = vld [vmem:[#allocation3 + $0x28] sm:$0xff]
      %v889 = vld [vmem:[#allocation3 + $0x30] sm:$0xff]
      %v890 = vld [vmem:[#allocation3 + $0x38] sm:$0xff]
      %v891 = vld [vmem:[#allocation3 + $0x40] sm:$0xff]
      %v892 = vld [vmem:[#allocation3 + $0x48] sm:$0xff]
      %v893 = vld [vmem:[#allocation3 + $0x50] sm:$0xff]
      %v894 = vld [vmem:[#allocation3 + $0x58] sm:$0xff]
      %v895 = vld [vmem:[#allocation3 + $0x60] sm:$0xff]
      %v896 = vld [vmem:[#allocation3 + $0x68] sm:$0xff]
      %v897 = vld [vmem:[#allocation3 + $0x70] sm:$0xff]
      %v898 = vld [vmem:[#allocation3 + $0x78] sm:$0xff]
      %v899 = vlog2.pop %v883
      %v900 = vmul.f32 %v899, 0.6931472
      %v901 = vlog2.pop %v884
      %v902 = vmul.f32 %v901, 0.6931472
      %v903 = vlog2.pop %v885
      %v904 = vmul.f32 %v903, 0.6931472
      %v905 = vlog2.pop %v886
      %v906 = vmul.f32 %v905, 0.6931472
      %v907 = vlog2.pop %v887
      %v908 = vmul.f32 %v907, 0.6931472
      %v909 = vlog2.pop %v888
      %v910 = vmul.f32 %v909, 0.6931472
      %v911 = vlog2.pop %v889
      %v912 = vmul.f32 %v911, 0.6931472
      %v913 = vlog2.pop %v890
      %v914 = vmul.f32 %v913, 0.6931472
      %v915 = vlog2.pop %v891
      %v916 = vmul.f32 %v915, 0.6931472
      %v917 = vlog2.pop %v892
      %v918 = vmul.f32 %v917, 0.6931472
      %v919 = vlog2.pop %v893
      %v920 = vmul.f32 %v919, 0.6931472
      %v921 = vlog2.pop %v894
      %v922 = vmul.f32 %v921, 0.6931472
      %v923 = vlog2.pop %v895
      %v924 = vmul.f32 %v923, 0.6931472
      %v925 = vlog2.pop %v896
      %v926 = vmul.f32 %v925, 0.6931472
      %v927 = vlog2.pop %v897
      %v928 = vmul.f32 %v927, 0.6931472
      %v929 = vlog2.pop %v898
      %v930 = vmul.f32 %v929, 0.6931472
      %v931 = vadd.f32 %v867, %v900
      %v932 = vadd.f32 %v868, %v902
      %v933 = vadd.f32 %v869, %v904
      %v934 = vadd.f32 %v870, %v906
      %v935 = vadd.f32 %v871, %v908
      %v936 = vadd.f32 %v872, %v910
      %v937 = vadd.f32 %v873, %v912
      %v938 = vadd.f32 %v874, %v914
      %v939 = vadd.f32 %v875, %v916
      %v940 = vadd.f32 %v876, %v918
      %v941 = vadd.f32 %v877, %v920
      %v942 = vadd.f32 %v878, %v922
      %v943 = vadd.f32 %v879, %v924
      %v944 = vadd.f32 %v880, %v926
      %v945 = vadd.f32 %v881, %v928
      %v946 = vadd.f32 %v882, %v930
      %v947 = vld [vmem:[#allocation4] sm:$0xff]
      %v948 = vld [vmem:[#allocation4 + $0x8] sm:$0xff]
      %v949 = vld [vmem:[#allocation4 + $0x10] sm:$0xff]
      %v950 = vld [vmem:[#allocation4 + $0x18] sm:$0xff]
      %v951 = vld [vmem:[#allocation4 + $0x20] sm:$0xff]
      %v952 = vld [vmem:[#allocation4 + $0x28] sm:$0xff]
      %v953 = vld [vmem:[#allocation4 + $0x30] sm:$0xff]
      %v954 = vld [vmem:[#allocation4 + $0x38] sm:$0xff]
      %v955 = vld [vmem:[#allocation4 + $0x40] sm:$0xff]
      %v956 = vld [vmem:[#allocation4 + $0x48] sm:$0xff]
      %v957 = vld [vmem:[#allocation4 + $0x50] sm:$0xff]
      %v958 = vld [vmem:[#allocation4 + $0x58] sm:$0xff]
      %v959 = vld [vmem:[#allocation4 + $0x60] sm:$0xff]
      %v960 = vld [vmem:[#allocation4 + $0x68] sm:$0xff]
      %v961 = vld [vmem:[#allocation4 + $0x70] sm:$0xff]
      %v962 = vld [vmem:[#allocation4 + $0x78] sm:$0xff]
      %v963 = vsub.f32 %v931, %v947
      %v964 = vsub.f32 %v932, %v948
      %v965 = vsub.f32 %v933, %v949
      %v966 = vsub.f32 %v934, %v950
      %v967 = vsub.f32 %v935, %v951
      %v968 = vsub.f32 %v936, %v952
      %v969 = vsub.f32 %v937, %v953
      %v970 = vsub.f32 %v938, %v954
      %v971 = vsub.f32 %v939, %v955
      %v972 = vsub.f32 %v940, %v956
      %v973 = vsub.f32 %v941, %v957
      %v974 = vsub.f32 %v942, %v958
      %v975 = vsub.f32 %v943, %v959
      %v976 = vsub.f32 %v944, %v960
      %v977 = vsub.f32 %v945, %v961
      %v978 = vsub.f32 %v946, %v962
      %vm979 = vcmp.ge.f32.partialorder %v947, %v867
      %vm980 = vcmp.ge.f32.partialorder %v948, %v868
      %vm981 = vcmp.ge.f32.partialorder %v949, %v869
      %vm982 = vcmp.ge.f32.partialorder %v950, %v870
      %vm983 = vcmp.ge.f32.partialorder %v951, %v871
      %vm984 = vcmp.ge.f32.partialorder %v952, %v872
      %vm985 = vcmp.ge.f32.partialorder %v953, %v873
      %vm986 = vcmp.ge.f32.partialorder %v954, %v874
      %vm987 = vcmp.ge.f32.partialorder %v955, %v875
      %vm988 = vcmp.ge.f32.partialorder %v956, %v876
      %vm989 = vcmp.ge.f32.partialorder %v957, %v877
      %vm990 = vcmp.ge.f32.partialorder %v958, %v878
      %vm991 = vcmp.ge.f32.partialorder %v959, %v879
      %vm992 = vcmp.ge.f32.partialorder %v960, %v880
      %vm993 = vcmp.ge.f32.partialorder %v961, %v881
      %vm994 = vcmp.ge.f32.partialorder %v962, %v882
      %v995 = vsel %vm979, 1, 0
      %v996 = vsel %vm980, 1, 0
      %v997 = vsel %vm981, 1, 0
      %v998 = vsel %vm982, 1, 0
      %v999 = vsel %vm983, 1, 0
      %v1000 = vsel %vm984, 1, 0
      %v1001 = vsel %vm985, 1, 0
      %v1002 = vsel %vm986, 1, 0
      %v1003 = vsel %vm987, 1, 0
      %v1004 = vsel %vm988, 1, 0
      %v1005 = vsel %vm989, 1, 0
      %v1006 = vsel %vm990, 1, 0
      %v1007 = vsel %vm991, 1, 0
      %v1008 = vsel %vm992, 1, 0
      %v1009 = vsel %vm993, 1, 0
      %v1010 = vsel %vm994, 1, 0
      %v1011 = vcvt.s32.f32 %v995
      %v1012 = vcvt.s32.f32 %v996
      %v1013 = vcvt.s32.f32 %v997
      %v1014 = vcvt.s32.f32 %v998
      %v1015 = vcvt.s32.f32 %v999
      %v1016 = vcvt.s32.f32 %v1000
      %v1017 = vcvt.s32.f32 %v1001
      %v1018 = vcvt.s32.f32 %v1002
      %v1019 = vcvt.s32.f32 %v1003
      %v1020 = vcvt.s32.f32 %v1004
      %v1021 = vcvt.s32.f32 %v1005
      %v1022 = vcvt.s32.f32 %v1006
      %v1023 = vcvt.s32.f32 %v1007
      %v1024 = vcvt.s32.f32 %v1008
      %v1025 = vcvt.s32.f32 %v1009
      %v1026 = vcvt.s32.f32 %v1010
      %s1027 = smul.u32 0, 128
      %v1028 = vlaneseq
      %v1029 = vshrl.u32 %v1028, 7
      %v1030 = vadd.s32 %v1029, 8
      %v1031 = vadd.s32 %v1029, 16
      %v1032 = vadd.s32 %v1029, 24
      %v1033 = vadd.s32 %v1029, 32
      %v1034 = vadd.s32 %v1029, 40
      %v1035 = vadd.s32 %v1029, 48
      %v1036 = vadd.s32 %v1029, 56
      %v1037 = vadd.s32 %v1029, 64
      %v1038 = vadd.s32 %v1029, 72
      %v1039 = vadd.s32 %v1029, 80
      %v1040 = vadd.s32 %v1029, 88
      %v1041 = vadd.s32 %v1029, 96
      %v1042 = vadd.s32 %v1029, 104
      %v1043 = vadd.s32 %v1029, 112
      %v1044 = vadd.s32 %v1029, 120
      %v1045 = vstv %s1027
      %v1046 = vadd.s32 %v1045, %v1029
      %v1047 = vadd.s32 %v1045, %v1030
      %v1048 = vadd.s32 %v1045, %v1031
      %v1049 = vadd.s32 %v1045, %v1032
      %v1050 = vadd.s32 %v1045, %v1033
      %v1051 = vadd.s32 %v1045, %v1034
      %v1052 = vadd.s32 %v1045, %v1035
      %v1053 = vadd.s32 %v1045, %v1036
      %v1054 = vadd.s32 %v1045, %v1037
      %v1055 = vadd.s32 %v1045, %v1038
      %v1056 = vadd.s32 %v1045, %v1039
      %v1057 = vadd.s32 %v1045, %v1040
      %v1058 = vadd.s32 %v1045, %v1041
      %v1059 = vadd.s32 %v1045, %v1042
      %v1060 = vadd.s32 %v1045, %v1043
      %v1061 = vadd.s32 %v1045, %v1044
      %vm1062 = vcmp.lt.s32.totalorder %v1046, 8
      %vm1063 = vcmp.lt.s32.totalorder %v1047, 8
      %vm1064 = vcmp.lt.s32.totalorder %v1048, 8
      %vm1065 = vcmp.lt.s32.totalorder %v1049, 8
      %vm1066 = vcmp.lt.s32.totalorder %v1050, 8
      %vm1067 = vcmp.lt.s32.totalorder %v1051, 8
      %vm1068 = vcmp.lt.s32.totalorder %v1052, 8
      %vm1069 = vcmp.lt.s32.totalorder %v1053, 8
      %vm1070 = vcmp.lt.s32.totalorder %v1054, 8
      %vm1071 = vcmp.lt.s32.totalorder %v1055, 8
      %vm1072 = vcmp.lt.s32.totalorder %v1056, 8
      %vm1073 = vcmp.lt.s32.totalorder %v1057, 8
      %vm1074 = vcmp.lt.s32.totalorder %v1058, 8
      %vm1075 = vcmp.lt.s32.totalorder %v1059, 8
      %vm1076 = vcmp.lt.s32.totalorder %v1060, 8
      %vm1077 = vcmp.lt.s32.totalorder %v1061, 8
      %v1078 = vsel %vm1062, %v963, 0.0
      %v1079 = vsel %vm1063, %v964, 0.0
      %v1080 = vsel %vm1064, %v965, 0.0
      %v1081 = vsel %vm1065, %v966, 0.0
      %v1082 = vsel %vm1066, %v967, 0.0
      %v1083 = vsel %vm1067, %v968, 0.0
      %v1084 = vsel %vm1068, %v969, 0.0
      %v1085 = vsel %vm1069, %v970, 0.0
      %v1086 = vsel %vm1070, %v971, 0.0
      %v1087 = vsel %vm1071, %v972, 0.0
      %v1088 = vsel %vm1072, %v973, 0.0
      %v1089 = vsel %vm1073, %v974, 0.0
      %v1090 = vsel %vm1074, %v975, 0.0
      %v1091 = vsel %vm1075, %v976, 0.0
      %v1092 = vsel %vm1076, %v977, 0.0
      %v1093 = vsel %vm1077, %v978, 0.0
      %v1094 = vsel %vm1062, %v1011, 0.0
      %v1095 = vsel %vm1063, %v1012, 0.0
      %v1096 = vsel %vm1064, %v1013, 0.0
      %v1097 = vsel %vm1065, %v1014, 0.0
      %v1098 = vsel %vm1066, %v1015, 0.0
      %v1099 = vsel %vm1067, %v1016, 0.0
      %v1100 = vsel %vm1068, %v1017, 0.0
      %v1101 = vsel %vm1069, %v1018, 0.0
      %v1102 = vsel %vm1070, %v1019, 0.0
      %v1103 = vsel %vm1071, %v1020, 0.0
      %v1104 = vsel %vm1072, %v1021, 0.0
      %v1105 = vsel %vm1073, %v1022, 0.0
      %v1106 = vsel %vm1074, %v1023, 0.0
      %v1107 = vsel %vm1075, %v1024, 0.0
      %v1108 = vsel %vm1076, %v1025, 0.0
      %v1109 = vsel %vm1077, %v1026, 0.0
      %v1110 = vsel %vm1062, %v947, 0.0
      %v1111 = vsel %vm1063, %v948, 0.0
      %v1112 = vsel %vm1064, %v949, 0.0
      %v1113 = vsel %vm1065, %v950, 0.0
      %v1114 = vsel %vm1066, %v951, 0.0
      %v1115 = vsel %vm1067, %v952, 0.0
      %v1116 = vsel %vm1068, %v953, 0.0
      %v1117 = vsel %vm1069, %v954, 0.0
      %v1118 = vsel %vm1070, %v955, 0.0
      %v1119 = vsel %vm1071, %v956, 0.0
      %v1120 = vsel %vm1072, %v957, 0.0
      %v1121 = vsel %vm1073, %v958, 0.0
      %v1122 = vsel %vm1074, %v959, 0.0
      %v1123 = vsel %vm1075, %v960, 0.0
      %v1124 = vsel %vm1076, %v961, 0.0
      %v1125 = vsel %vm1077, %v962, 0.0
      %v1126 = vsel %vm730, %v1078, 0.0
      %v1127 = vsel %vm730, %v1079, 0.0
      %v1128 = vadd.f32 %v1126, %v1127
      %v1129 = vsel %vm730, %v1080, 0.0
      %v1130 = vadd.f32 %v1128, %v1129
      %v1131 = vsel %vm730, %v1081, 0.0
      %v1132 = vadd.f32 %v1130, %v1131
      %v1133 = vsel %vm730, %v1082, 0.0
      %v1134 = vadd.f32 %v1132, %v1133
      %v1135 = vsel %vm730, %v1083, 0.0
      %v1136 = vadd.f32 %v1134, %v1135
      %v1137 = vsel %vm730, %v1084, 0.0
      %v1138 = vadd.f32 %v1136, %v1137
      %v1139 = vsel %vm730, %v1085, 0.0
      %v1140 = vadd.f32 %v1138, %v1139
      %v1141 = vsel %vm730, %v1086, 0.0
      %v1142 = vadd.f32 %v1140, %v1141
      %v1143 = vsel %vm730, %v1087, 0.0
      %v1144 = vadd.f32 %v1142, %v1143
      %v1145 = vsel %vm730, %v1088, 0.0
      %v1146 = vadd.f32 %v1144, %v1145
      %v1147 = vsel %vm730, %v1089, 0.0
      %v1148 = vadd.f32 %v1146, %v1147
      %v1149 = vsel %vm730, %v1090, 0.0
      %v1150 = vadd.f32 %v1148, %v1149
      %v1151 = vsel %vm730, %v1091, 0.0
      %v1152 = vadd.f32 %v1150, %v1151
      %v1153 = vsel %vm730, %v1092, 0.0
      %v1154 = vadd.f32 %v1152, %v1153
      %v1155 = vsel %vm730, %v1093, 0.0
      %v1156 = vadd.f32 %v1154, %v1155
      %1157 = vadd.xlane.f32.xlu0 %v1156
      %v1158 = vpop.xlane.xlu0 %1157
      %v1159 = vrot.slane %v1158, 4
      %v1160 = vadd.f32 %v1158, %v1159
      %v1161 = vrot.slane %v1160, 2
      %v1162 = vadd.f32 %v1160, %v1161
      %v1163 = vrot.slane %v1162, 1
      %v1164 = vadd.f32 %v1162, %v1163
      %s1165 = vtos %v1164
      %v1166 = vsel %vm730, %v1094, 0.0
      %v1167 = vsel %vm730, %v1095, 0.0
      %v1168 = vadd.f32 %v1166, %v1167
      %v1169 = vsel %vm730, %v1096, 0.0
      %v1170 = vadd.f32 %v1168, %v1169
      %v1171 = vsel %vm730, %v1097, 0.0
      %v1172 = vadd.f32 %v1170, %v1171
      %v1173 = vsel %vm730, %v1098, 0.0
      %v1174 = vadd.f32 %v1172, %v1173
      %v1175 = vsel %vm730, %v1099, 0.0
      %v1176 = vadd.f32 %v1174, %v1175
      %v1177 = vsel %vm730, %v1100, 0.0
      %v1178 = vadd.f32 %v1176, %v1177
      %v1179 = vsel %vm730, %v1101, 0.0
      %v1180 = vadd.f32 %v1178, %v1179
      %v1181 = vsel %vm730, %v1102, 0.0
      %v1182 = vadd.f32 %v1180, %v1181
      %v1183 = vsel %vm730, %v1103, 0.0
      %v1184 = vadd.f32 %v1182, %v1183
      %v1185 = vsel %vm730, %v1104, 0.0
      %v1186 = vadd.f32 %v1184, %v1185
      %v1187 = vsel %vm730, %v1105, 0.0
      %v1188 = vadd.f32 %v1186, %v1187
      %v1189 = vsel %vm730, %v1106, 0.0
      %v1190 = vadd.f32 %v1188, %v1189
      %v1191 = vsel %vm730, %v1107, 0.0
      %v1192 = vadd.f32 %v1190, %v1191
      %v1193 = vsel %vm730, %v1108, 0.0
      %v1194 = vadd.f32 %v1192, %v1193
      %v1195 = vsel %vm730, %v1109, 0.0
      %v1196 = vadd.f32 %v1194, %v1195
      %1197 = vadd.xlane.f32.xlu0 %v1196
      %v1198 = vpop.xlane.xlu0 %1197
      %v1199 = vrot.slane %v1198, 4
      %v1200 = vadd.f32 %v1198, %v1199
      %v1201 = vrot.slane %v1200, 2
      %v1202 = vadd.f32 %v1200, %v1201
      %v1203 = vrot.slane %v1202, 1
      %v1204 = vadd.f32 %v1202, %v1203
      %s1205 = vtos %v1204
      %v1206 = vsel %vm730, %v1110, 0.0
      %v1207 = vsel %vm730, %v1111, 0.0
      %v1208 = vadd.f32 %v1206, %v1207
      %v1209 = vsel %vm730, %v1112, 0.0
      %v1210 = vadd.f32 %v1208, %v1209
      %v1211 = vsel %vm730, %v1113, 0.0
      %v1212 = vadd.f32 %v1210, %v1211
      %v1213 = vsel %vm730, %v1114, 0.0
      %v1214 = vadd.f32 %v1212, %v1213
      %v1215 = vsel %vm730, %v1115, 0.0
      %v1216 = vadd.f32 %v1214, %v1215
      %v1217 = vsel %vm730, %v1116, 0.0
      %v1218 = vadd.f32 %v1216, %v1217
      %v1219 = vsel %vm730, %v1117, 0.0
      %v1220 = vadd.f32 %v1218, %v1219
      %v1221 = vsel %vm730, %v1118, 0.0
      %v1222 = vadd.f32 %v1220, %v1221
      %v1223 = vsel %vm730, %v1119, 0.0
      %v1224 = vadd.f32 %v1222, %v1223
      %v1225 = vsel %vm730, %v1120, 0.0
      %v1226 = vadd.f32 %v1224, %v1225
      %v1227 = vsel %vm730, %v1121, 0.0
      %v1228 = vadd.f32 %v1226, %v1227
      %v1229 = vsel %vm730, %v1122, 0.0
      %v1230 = vadd.f32 %v1228, %v1229
      %v1231 = vsel %vm730, %v1123, 0.0
      %v1232 = vadd.f32 %v1230, %v1231
      %v1233 = vsel %vm730, %v1124, 0.0
      %v1234 = vadd.f32 %v1232, %v1233
      %v1235 = vsel %vm730, %v1125, 0.0
      %v1236 = vadd.f32 %v1234, %v1235
      %1237 = vadd.xlane.f32.xlu0 %v1236
      %v1238 = vpop.xlane.xlu0 %1237
      %v1239 = vrot.slane %v1238, 4
      %v1240 = vadd.f32 %v1238, %v1239
      %v1241 = vrot.slane %v1240, 2
      %v1242 = vadd.f32 %v1240, %v1241
      %v1243 = vrot.slane %v1242, 1
      %v1244 = vadd.f32 %v1242, %v1243
      %s1245 = vtos %v1244
      %vm1246 = vcmp.eq.s32.totalorder %v1029, 0
      %vm1247 = vcmp.eq.s32.totalorder %v335, 0
      %vm1248 = vmand %vm1246, %vm1247
      %v1249 = vstv %s1165
      %v1250 = vsel %vm1248, %v1249, 0.0
      %vm1251 = vcmp.eq.s32.totalorder %v335, 1
      %vm1252 = vmand %vm1246, %vm1251
      %v1253 = vstv %s1205
      %v1254 = vsel %vm1252, %v1253, %v1250
      %vm1255 = vcmp.eq.s32.totalorder %v335, 2
      %vm1256 = vmand %vm1246, %vm1255
      %v1257 = vstv %s1245
      %v1258 = vsel %vm1256, %v1257, %v1254
      %1259 = vst [vmem:[#allocation11] sm:$0xff] %v1258
    $region29: #{tpu_custom_call.1} parent=1 // pred_fallthru
      _
    // Predicated region
    $region30: #{tpu_custom_call.1} parent=1 // pred_check
      _
    $region31: #{tpu_custom_call.1} parent=1 // pred_check_branch
      %1261 = sbr.rel (0) target = $region33
    $region32: #{tpu_custom_call.1} parent=1 // pred_region
      %s1263 = ssub.s32 2048, 128
      %1264 = vsyncadd [#allocation7], %s1263
      %s1265 = sshll.u32 [#allocation10], 4
      %s1266 = int_to_ptr.vmem [resolvable:$true] %s1265
      %1271 = dma.vmem_to_hbm [thread:$0]  %s1266, 128, %s2, [#allocation7], 128, 128, 8
    $region33: #{tpu_custom_call.1} parent=1 // pred_fallthru
      _
    // Predicated region
    $region34: #{tpu_custom_call.1} parent=1 // pred_check
      _
    $region35: #{tpu_custom_call.1} parent=1 // pred_check_branch
      %1273 = sbr.rel (0) target = $region37
    $region36: #{tpu_custom_call.1} parent=1 // pred_region
      %s1275 = ssub.s32 128, 128
      %1276 = vsyncadd [#allocation12], %s1275
      %s1278 = sshll.u32 [#allocation11], 4
      %s1279 = int_to_ptr.vmem [resolvable:$true] %s1278
      %1281 = dma.vmem_to_hbm [thread:$0]  %s1279, 128, %s3, [#allocation12]
    $region37: #{tpu_custom_call.1} parent=1 // pred_fallthru
      _
    // Predicated region
    $region38: #{tpu_custom_call.1} parent=1 // pred_check
      _
    $region39: #{tpu_custom_call.1} parent=1 // pred_check_branch
      %1283 = sbr.rel (0) target = $region41
    $region40: #{tpu_custom_call.1} parent=1 // pred_region
      %1284 = dma.done [#allocation7], 2048
    $region41: #{tpu_custom_call.1} parent=1 // pred_fallthru
      _
    // Predicated region
    $region42: #{tpu_custom_call.1} parent=1 // pred_check
      _
    $region43: #{tpu_custom_call.1} parent=1 // pred_check_branch
      %1286 = sbr.rel (0) target = $region45
    $region44: #{tpu_custom_call.1} parent=1 // pred_region
      %1287 = dma.done [#allocation12], 128
    $region45: #{tpu_custom_call.1} parent=1 // pred_fallthru
      _
    %1288 = vsyncpa [#allocation6], 1
    %1289 = vsyncpa [#allocation9], 1
    %1290 = vsyncpa [#allocation7], 1
    %1291 = vsyncpa [#allocation12], 1

</llo_original>
